<compile_context>
chip_gen: v6e
topology: v6e:2x2x1
jax: 0.10.0
libtpu: 0.0.40
codegen_flags: <defaults>
</compile_context>

<pallas_src>
import jax
import jax.numpy as jnp
from jax.experimental import pallas as pl
from jax.experimental.pallas import tpu as pltpu


def _match_kernel(feats_ref, obj_ref, lang_ref,
                  wfa_ref, w1_ref, b1_ref, w2_ref, b2_ref,
                  w3_ref, b3_ref,
                  out_ref):
    feats = feats_ref[0]                      # (C, K)  bf16, channels-first
    obj = obj_ref[0]                          # (2, K)  f32
    lang = lang_ref[0]                        # (H, 1)  f32  (= lang_emb @ Wfb + b_fuse)

    # objectness_scores.max(2)[1].float(): 1.0 iff class-1 strictly wins (argmax first-max).
    mask = jnp.where(obj[1:2, :] > obj[0:1, :], 1.0, 0.0)        # (1, K)

    # fuse = Conv1d(lang_size+256 -> H, 1) + ReLU, concat split as feats-part + lang-part.
    h = jnp.dot(wfa_ref[...], feats, preferred_element_type=jnp.float32)   # (H, K) f32
    h = jnp.maximum(h + lang, 0.0) * mask                        # ReLU + objectness masking

    # match head with BN folded into the downstream convs: matmul -> ReLU -> matmul -> ReLU.
    m = jnp.dot(w1_ref[...], h.astype(jnp.bfloat16),
                preferred_element_type=jnp.float32) + b1_ref[...]           # (H, K)
    m = jnp.maximum(m, 0.0)
    m = jnp.dot(w2_ref[...], m.astype(jnp.bfloat16),
                preferred_element_type=jnp.float32) + b2_ref[...]           # (H, K)
    m = jnp.maximum(m, 0.0)

    # Final 1x1 conv (H -> 1) as VPU multiply + sublane reduce (avoids an N=1 MXU matmul).
    conf = jnp.sum(m * w3_ref[...], axis=0, keepdims=True) + b3_ref[...]    # (1, K)
    out_ref[0] = conf


def match_module_forward(fused_feats, objectness_scores, lang_emb, params):
    """fused_feats (B,256,K), objectness_scores (B,K,2), lang_emb (B,L) -> cluster_ref (B,K)."""
    B, C, K = fused_feats.shape
    H = params["w1"].shape[0]
    bf16 = jnp.bfloat16

    # ---- one-time weight plumbing (tiny; channels-first transposes + BN folds + bf16) ----
    s1, t1, s2, t2 = params["s1"], params["t1"], params["s2"], params["t2"]
    wfa_t = params["wfa"].T.astype(bf16)                                   # (H, C)
    w1_t = params["w1"].T.astype(bf16)                                     # (H, H)
    b1_c = params["b1"].T                                                  # (H, 1) f32
    w2_t = (params["w2"] * s1.T).T.astype(bf16)                            # BN1 folded, (H, H)
    b2_c = (t1 @ params["w2"] + params["b2"]).T                            # (H, 1) f32
    w3_c = params["w3"] * s2.T                                             # BN2 folded, (H, 1) f32
    b3_s = t2 @ params["w3"] + params["b3"]                                # (1, 1) f32

    # Language projection hoisted out of the kernel (includes the fuse bias); (B, H, 1) column.
    lang_col = (lang_emb @ params["wfb"] + params["bf"])[:, :, None]       # f32

    # Inputs: keep channels-first (no transpose of fused_feats); cast MXU operand to bf16.
    # TODO(synk): in a real pipeline the upstream producer would emit bf16 directly.
    feats_bf = fused_feats.astype(bf16)                                    # (B, C, K)
    obj_t = jnp.transpose(objectness_scores, (0, 2, 1))                    # (B, 2, K), tiny

    def wspec(shape):
        return pl.BlockSpec(shape, lambda b: (0,) * len(shape))

    out = pl.pallas_call(
        _match_kernel,
        out_shape=jax.ShapeDtypeStruct((B, 1, K), jnp.float32),            # lane-dense (K on lanes)
        grid=(B,),
        in_specs=[
            pl.BlockSpec((1, C, K), lambda b: (b, 0, 0)),                  # feats (channels-first)
            pl.BlockSpec((1, 2, K), lambda b: (b, 0, 0)),                  # objectness (2, K)
            pl.BlockSpec((1, H, 1), lambda b: (b, 0, 0)),                  # hoisted lang column
            wspec((H, C)),                                                 # fuse weight^T (bf16)
            wspec((H, H)), wspec((H, 1)),                                  # match conv1 (bf16) + bias
            wspec((H, H)), wspec((H, 1)),                                  # match conv2 (BN1 folded)
            wspec((H, 1)), wspec((1, 1)),                                  # final H->1 (BN2 folded)
        ],
        out_specs=pl.BlockSpec((1, 1, K), lambda b: (b, 0, 0)),
        compiler_params=pltpu.CompilerParams(dimension_semantics=("parallel",)),
    )(feats_bf, obj_t, lang_col,
      wfa_t, w1_t, b1_c, w2_t, b2_c, w3_c, b3_s)
    return out[:, 0, :]                                                    # free unit-dim drop -> (B, K)


def reference_forward(fused_feats, objectness_scores, lang_emb, params):
    """Pure-JAX f32 mirror of the PyTorch forward (default branch, eval-mode BN, unfolded)."""
    B, C, K = fused_feats.shape
    feats = jnp.transpose(fused_feats, (0, 2, 1))
    lang = jnp.broadcast_to(lang_emb[:, None, :], (B, K, lang_emb.shape[-1]))
    x = jnp.concatenate([feats, lang], axis=-1)
    mask = (objectness_scores[..., 1] > objectness_scores[..., 0]).astype(jnp.float32)[..., None]
    wf = jnp.concatenate([params["wfa"], params["wfb"]], axis=0)
    h = jax.nn.relu(x @ wf + params["bf"]) * mask
    m = jax.nn.relu(h @ params["w1"] + params["b1"]) * params["s1"] + params["t1"]
    m = jax.nn.relu(m @ params["w2"] + params["b2"]) * params["s2"] + params["t2"]
    return (m @ params["w3"] + params["b3"])[..., 0]


def init_params(key, feat_dim=256, lang_size=128, hidden=128):
    ks = jax.random.split(key, 16)
    f32 = jnp.float32

    def bn_fold(kg, kb, km, kv, n, eps=1e-5):
        gamma = 1.0 + 0.1 * jax.random.normal(kg, (1, n), f32)
        beta = 0.1 * jax.random.normal(kb, (1, n), f32)
        mean = 0.1 * jax.random.normal(km, (1, n), f32)
        var = jnp.abs(jax.random.normal(kv, (1, n), f32)) + 0.5
        s = gamma / jnp.sqrt(var + eps)
        t = beta - mean * s
        return s, t

    s1, t1 = bn_fold(ks[8], ks[9], ks[10], ks[11], hidden)
    s2, t2 = bn_fold(ks[12], ks[13], ks[14], ks[15], hidden)
    return {
        "wfa": 0.05 * jax.random.normal(ks[0], (feat_dim, hidden), f32),
        "wfb": 0.05 * jax.random.normal(ks[1], (lang_size, hidden), f32),
        "bf": 0.05 * jax.random.normal(ks[2], (1, hidden), f32),
        "w1": 0.05 * jax.random.normal(ks[3], (hidden, hidden), f32),
        "b1": 0.05 * jax.random.normal(ks[4], (1, hidden), f32),
        "w2": 0.05 * jax.random.normal(ks[5], (hidden, hidden), f32),
        "b2": 0.05 * jax.random.normal(ks[6], (1, hidden), f32),
        "w3": 0.05 * jax.random.normal(ks[7], (hidden, 1), f32),
        "b3": jnp.zeros((1, 1), f32),
        "s1": s1, "t1": t1, "s2": s2, "t2": t2,
    }


if __name__ == "__main__":
    B, K, C, L, H = 2, 128, 256, 128, 128     # batch, num_proposals, feat ch, lang_size, hidden

    key = jax.random.PRNGKey(0)
    k_f, k_o, k_l, k_p = jax.random.split(key, 4)
    fused_feats = jax.random.normal(k_f, (B, C, K), jnp.float32)          # data_dict['fused_feats']
    objectness_scores = jax.random.normal(k_o, (B, K, 2), jnp.float32)    # data_dict['objectness_scores']
    lang_emb = jax.random.normal(k_l, (B, L), jnp.float32)                # data_dict['lang_emb']
    params = init_params(k_p, feat_dim=C, lang_size=L, hidden=H)

    cluster_ref = jax.jit(match_module_forward)(fused_feats, objectness_scores, lang_emb, params)
    jax.block_until_ready(cluster_ref)
    assert cluster_ref.shape == (B, K)

    ref = reference_forward(fused_feats, objectness_scores, lang_emb, params)
    max_err = float(jnp.max(jnp.abs(cluster_ref - ref)))
    # bf16 MXU operands + BN folding change rounding order -> compare at bf16-level tolerance.
    assert jnp.allclose(cluster_ref, ref, rtol=2e-2, atol=2e-2), \
        f"mismatch vs pure-JAX reference (max abs err={max_err})"

    print("KERNEL_OK")
</pallas_src>

<mosaic_0001>
module attributes {stable_mosaic.version = 11 : i64} {
  func.func @_match_kernel(%arg0: i32, %arg1: memref<1x256x128xbf16, #tpu.memory_space<vmem>>, %arg2: memref<1x2x128xf32, #tpu.memory_space<vmem>>, %arg3: memref<1x128x1xf32, #tpu.memory_space<vmem>>, %arg4: memref<128x256xbf16, #tpu.memory_space<vmem>>, %arg5: memref<128x128xbf16, #tpu.memory_space<vmem>>, %arg6: memref<128x1xf32, #tpu.memory_space<vmem>>, %arg7: memref<128x128xbf16, #tpu.memory_space<vmem>>, %arg8: memref<128x1xf32, #tpu.memory_space<vmem>>, %arg9: memref<128x1xf32, #tpu.memory_space<vmem>>, %arg10: memref<1x1xf32, #tpu.memory_space<vmem>>, %arg11: memref<1x1x128xf32, #tpu.memory_space<vmem>>) attributes {dimension_semantics = [#tpu.dimension_semantics<parallel>], iteration_bounds = array<i64: 2>, scalar_prefetch = 0 : i64, scratch_operands = 0 : i64, tpu.core_type = #tpu.core_type<tc>, window_params = [{transform_indices = @transform_0, window_bounds = array<i64: 1, 256, 128>}, {transform_indices = @transform_1, window_bounds = array<i64: 1, 2, 128>}, {transform_indices = @transform_2, window_bounds = array<i64: 1, 128, 1>}, {pipeline_mode = #tpu.pipeline_mode<synchronous>, transform_indices = @transform_3, window_bounds = array<i64: 128, 256>}, {pipeline_mode = #tpu.pipeline_mode<synchronous>, transform_indices = @transform_4, window_bounds = array<i64: 128, 128>}, {pipeline_mode = #tpu.pipeline_mode<synchronous>, transform_indices = @transform_5, window_bounds = array<i64: 128, 1>}, {pipeline_mode = #tpu.pipeline_mode<synchronous>, transform_indices = @transform_6, window_bounds = array<i64: 128, 128>}, {pipeline_mode = #tpu.pipeline_mode<synchronous>, transform_indices = @transform_7, window_bounds = array<i64: 128, 1>}, {pipeline_mode = #tpu.pipeline_mode<synchronous>, transform_indices = @transform_8, window_bounds = array<i64: 128, 1>}, {pipeline_mode = #tpu.pipeline_mode<synchronous>, transform_indices = @transform_9, window_bounds = array<i64: 1, 1>}, {transform_indices = @transform_10, window_bounds = array<i64: 1, 1, 128>}]} {
    %c0 = arith.constant 0 : index
    %c0_0 = arith.constant 0 : index
    %c0_1 = arith.constant 0 : index
    %0 = vector.load %arg1[%c0, %c0_0, %c0_1] : memref<1x256x128xbf16, #tpu.memory_space<vmem>>, vector<1x256x128xbf16>
    %1 = vector.shape_cast %0 : vector<1x256x128xbf16> to vector<256x128xbf16>
    %c0_2 = arith.constant 0 : index
    %c0_3 = arith.constant 0 : index
    %c0_4 = arith.constant 0 : index
    %2 = vector.load %arg2[%c0_2, %c0_3, %c0_4] : memref<1x2x128xf32, #tpu.memory_space<vmem>>, vector<1x2x128xf32>
    %3 = vector.shape_cast %2 : vector<1x2x128xf32> to vector<2x128xf32>
    %c0_5 = arith.constant 0 : index
    %c0_6 = arith.constant 0 : index
    %c0_7 = arith.constant 0 : index
    %4 = vector.load %arg3[%c0_5, %c0_6, %c0_7] : memref<1x128x1xf32, #tpu.memory_space<vmem>>, vector<1x128x1xf32>
    %5 = vector.shape_cast %4 : vector<1x128x1xf32> to vector<128x1xf32>
    %6 = vector.extract_strided_slice %3 {offsets = [1, 0], sizes = [1, 128], strides = [1, 1]} : vector<2x128xf32> to vector<1x128xf32>
    %7 = vector.extract_strided_slice %3 {offsets = [0, 0], sizes = [1, 128], strides = [1, 1]} : vector<2x128xf32> to vector<1x128xf32>
    %8 = arith.cmpf ogt, %6, %7 : vector<1x128xf32>
    %cst = arith.constant 1.000000e+00 : f32
    %cst_8 = arith.constant 0.000000e+00 : f32
    %9 = vector.broadcast %cst : f32 to vector<1x128xf32>
    %10 = vector.broadcast %cst_8 : f32 to vector<1x128xf32>
    %11 = arith.select %8, %9, %10 : vector<1x128xi1>, vector<1x128xf32>
    %c0_9 = arith.constant 0 : index
    %c0_10 = arith.constant 0 : index
    %12 = vector.load %arg4[%c0_9, %c0_10] : memref<128x256xbf16, #tpu.memory_space<vmem>>, vector<128x256xbf16>
    %cst_11 = arith.constant dense<0.000000e+00> : vector<128x128xf32>
    %13 = tpu.matmul %12, %1, %cst_11 {dimension_numbers = #tpu.dot_dimension_numbers<[1], [0], [0], [1], [0, 0, 1, 1], [], []>} : vector<128x256xbf16>, vector<256x128xbf16>, vector<128x128xf32> -> vector<128x128xf32>
    %14 = vector.broadcast %5 : vector<128x1xf32> to vector<128x128xf32>
    %15 = arith.addf %13, %14 : vector<128x128xf32>
    %cst_12 = arith.constant 0.000000e+00 : f32
    %16 = vector.broadcast %cst_12 : f32 to vector<128x128xf32>
    %17 = arith.maximumf %15, %16 : vector<128x128xf32>
    %18 = vector.broadcast %11 : vector<1x128xf32> to vector<128x128xf32>
    %19 = arith.mulf %17, %18 : vector<128x128xf32>
    %c0_13 = arith.constant 0 : index
    %c0_14 = arith.constant 0 : index
    %20 = vector.load %arg5[%c0_13, %c0_14] : memref<128x128xbf16, #tpu.memory_space<vmem>>, vector<128x128xbf16>
    %21 = arith.truncf %19 : vector<128x128xf32> to vector<128x128xbf16>
    %cst_15 = arith.constant dense<0.000000e+00> : vector<128x128xf32>
    %22 = tpu.matmul %20, %21, %cst_15 {dimension_numbers = #tpu.dot_dimension_numbers<[1], [0], [0], [1], [0, 0, 1, 1], [], []>} : vector<128x128xbf16>, vector<128x128xbf16>, vector<128x128xf32> -> vector<128x128xf32>
    %c0_16 = arith.constant 0 : index
    %c0_17 = arith.constant 0 : index
    %23 = vector.load %arg6[%c0_16, %c0_17] : memref<128x1xf32, #tpu.memory_space<vmem>>, vector<128x1xf32>
    %24 = vector.broadcast %23 : vector<128x1xf32> to vector<128x128xf32>
    %25 = arith.addf %22, %24 : vector<128x128xf32>
    %cst_18 = arith.constant 0.000000e+00 : f32
    %26 = vector.broadcast %cst_18 : f32 to vector<128x128xf32>
    %27 = arith.maximumf %25, %26 : vector<128x128xf32>
    %c0_19 = arith.constant 0 : index
    %c0_20 = arith.constant 0 : index
    %28 = vector.load %arg7[%c0_19, %c0_20] : memref<128x128xbf16, #tpu.memory_space<vmem>>, vector<128x128xbf16>
    %29 = arith.truncf %27 : vector<128x128xf32> to vector<128x128xbf16>
    %cst_21 = arith.constant dense<0.000000e+00> : vector<128x128xf32>
    %30 = tpu.matmul %28, %29, %cst_21 {dimension_numbers = #tpu.dot_dimension_numbers<[1], [0], [0], [1], [0, 0, 1, 1], [], []>} : vector<128x128xbf16>, vector<128x128xbf16>, vector<128x128xf32> -> vector<128x128xf32>
    %c0_22 = arith.constant 0 : index
    %c0_23 = arith.constant 0 : index
    %31 = vector.load %arg8[%c0_22, %c0_23] : memref<128x1xf32, #tpu.memory_space<vmem>>, vector<128x1xf32>
    %32 = vector.broadcast %31 : vector<128x1xf32> to vector<128x128xf32>
    %33 = arith.addf %30, %32 : vector<128x128xf32>
    %cst_24 = arith.constant 0.000000e+00 : f32
    %34 = vector.broadcast %cst_24 : f32 to vector<128x128xf32>
    %35 = arith.maximumf %33, %34 : vector<128x128xf32>
    %c0_25 = arith.constant 0 : index
    %c0_26 = arith.constant 0 : index
    %36 = vector.load %arg9[%c0_25, %c0_26] : memref<128x1xf32, #tpu.memory_space<vmem>>, vector<128x1xf32>
    %37 = vector.broadcast %36 : vector<128x1xf32> to vector<128x128xf32>
    %38 = arith.mulf %35, %37 : vector<128x128xf32>
    %cst_27 = arith.constant dense<0.000000e+00> : vector<128xf32>
    %39 = vector.multi_reduction <add>, %38, %cst_27 [0] : vector<128x128xf32> to vector<128xf32>
    %40 = vector.shape_cast %39 : vector<128xf32> to vector<1x128xf32>
    %c0_28 = arith.constant 0 : index
    %c0_29 = arith.constant 0 : index
    %41 = vector.load %arg10[%c0_28, %c0_29] : memref<1x1xf32, #tpu.memory_space<vmem>>, vector<1x1xf32>
    %42 = vector.broadcast %41 : vector<1x1xf32> to vector<1x128xf32>
    %43 = arith.addf %40, %42 : vector<1x128xf32>
    %c0_30 = arith.constant 0 : index
    %c0_31 = arith.constant 0 : index
    %c0_32 = arith.constant 0 : index
    %44 = vector.load %arg11[%c0_30, %c0_31, %c0_32] : memref<1x1x128xf32, #tpu.memory_space<vmem>>, vector<1x1x128xf32>
    %45 = vector.shape_cast %44 : vector<1x1x128xf32> to vector<1x128xf32>
    %46 = vector.shape_cast %43 : vector<1x128xf32> to vector<1x1x128xf32>
    tpu.vector_store %arg11[%c0_30, %c0_31, %c0_32], %46 {strides = array<i32>} : memref<1x1x128xf32, #tpu.memory_space<vmem>>, vector<1x1x128xf32>,
    return
  }
  func.func @transform_0(%arg0: i32) -> (i32, i32, i32) {
    %c0_i32 = arith.constant 0 : i32
    %c0_i32_0 = arith.constant 0 : i32
    %c0_i32_1 = arith.constant 0 : i32
    return %arg0, %c0_i32, %c0_i32_0 : i32, i32, i32
  }
  func.func @transform_1(%arg0: i32) -> (i32, i32, i32) {
    %c0_i32 = arith.constant 0 : i32
    %c0_i32_0 = arith.constant 0 : i32
    %c0_i32_1 = arith.constant 0 : i32
    return %arg0, %c0_i32, %c0_i32_0 : i32, i32, i32
  }
  func.func @transform_2(%arg0: i32) -> (i32, i32, i32) {
    %c0_i32 = arith.constant 0 : i32
    %c0_i32_0 = arith.constant 0 : i32
    %c0_i32_1 = arith.constant 0 : i32
    return %arg0, %c0_i32, %c0_i32_0 : i32, i32, i32
  }
  func.func @transform_3(%arg0: i32) -> (i32, i32) {
    %c0_i32 = arith.constant 0 : i32
    %c0_i32_0 = arith.constant 0 : i32
    %c0_i32_1 = arith.constant 0 : i32
    return %c0_i32, %c0_i32_0 : i32, i32
  }
  func.func @transform_4(%arg0: i32) -> (i32, i32) {
    %c0_i32 = arith.constant 0 : i32
    %c0_i32_0 = arith.constant 0 : i32
    %c0_i32_1 = arith.constant 0 : i32
    return %c0_i32, %c0_i32_0 : i32, i32
  }
  func.func @transform_5(%arg0: i32) -> (i32, i32) {
    %c0_i32 = arith.constant 0 : i32
    %c0_i32_0 = arith.constant 0 : i32
    %c0_i32_1 = arith.constant 0 : i32
    return %c0_i32, %c0_i32_0 : i32, i32
  }
  func.func @transform_6(%arg0: i32) -> (i32, i32) {
    %c0_i32 = arith.constant 0 : i32
    %c0_i32_0 = arith.constant 0 : i32
    %c0_i32_1 = arith.constant 0 : i32
    return %c0_i32, %c0_i32_0 : i32, i32
  }
  func.func @transform_7(%arg0: i32) -> (i32, i32) {
    %c0_i32 = arith.constant 0 : i32
    %c0_i32_0 = arith.constant 0 : i32
    %c0_i32_1 = arith.constant 0 : i32
    return %c0_i32, %c0_i32_0 : i32, i32
  }
  func.func @transform_8(%arg0: i32) -> (i32, i32) {
    %c0_i32 = arith.constant 0 : i32
    %c0_i32_0 = arith.constant 0 : i32
    %c0_i32_1 = arith.constant 0 : i32
    return %c0_i32, %c0_i32_0 : i32, i32
  }
  func.func @transform_9(%arg0: i32) -> (i32, i32) {
    %c0_i32 = arith.constant 0 : i32
    %c0_i32_0 = arith.constant 0 : i32
    %c0_i32_1 = arith.constant 0 : i32
    return %c0_i32, %c0_i32_0 : i32, i32
  }
  func.func @transform_10(%arg0: i32) -> (i32, i32, i32) {
    %c0_i32 = arith.constant 0 : i32
    %c0_i32_0 = arith.constant 0 : i32
    %c0_i32_1 = arith.constant 0 : i32
    return %arg0, %c0_i32, %c0_i32_0 : i32, i32, i32
  }
}

</mosaic_0001>

<llo_original>
// kernel: match_module_forward.1
$region0: #{match_module_forward.1}
  #allocation0 [shape = 'u32[]', space=smem, size = 0x4, offset = 0x4, fixed_abs, tag = 'smem constant byte address 0x4 - core index']
  #allocation1 [shape = 'u32[144,128]{1,0:T(1,128)}', space=vmem, size = 0x12000, scoped, tag = 'internal scratch']
  #allocation2 [shape = 'f32[1,1]{1,0:T(1,128)S(1)}', space=vmem, size = 0x200, scoped, tag = 'scoped memory for match_module_forward.1']
  %s0 = inlined_call_operand.vmem [shape: bf16[2,256,128], index: 0, kind: input, shape index: {}]
  %s1 = inlined_call_operand.vmem [shape: f32[2,2,128], index: 1, kind: input, shape index: {}]
  %s2 = inlined_call_operand.vmem [shape: f32[2,128,1], index: 2, kind: input, shape index: {}]
  %s3 = inlined_call_operand.vmem [shape: bf16[128,256], index: 3, kind: input, shape index: {}]
  %s4 = inlined_call_operand.vmem [shape: bf16[128,128], index: 4, kind: input, shape index: {}]
  %s5 = inlined_call_operand.vmem [shape: f32[128,1], index: 5, kind: input, shape index: {}]
  %s6 = inlined_call_operand.vmem [shape: bf16[128,128], index: 6, kind: input, shape index: {}]
  %s7 = inlined_call_operand.vmem [shape: f32[128,1], index: 7, kind: input, shape index: {}]
  %s8 = inlined_call_operand.vmem [shape: f32[128,1], index: 8, kind: input, shape index: {}]
  %s9 = inlined_call_operand.<no memory space> [shape: f32[1,1], index: 9, kind: input, shape index: {}]
  %s10 = inlined_call_operand.hbm [shape: f32[2,1,128], index: 10, kind: output, shape index: {}]
  %s11 = sld [smem:[#allocation0]]
  $region73: #{match_module_forward.1} parent=0
    _
  %s13 = ssub.s32 1, %s11
  %s14 = scalar_select 0, %s13, %s11
  %v15 = vstv %s9
  %16 = vst [vmem:[#allocation2] sm:$0x1] %v15
  $region1: #{match_module_forward.1} parent=0
    #allocation3 [shape = 'u8[1024]{0}', space=vmem, size = 0x400, scoped, tag = 'output window, operand 0']
    #allocation4 [shape = 's32[2]{0}', space=sflag, size = 0x8, scoped, tag = 'scoped memory for match_module_forward.1']
    %17 = vsyncpa [#allocation4], 0
    %s18 = scalar_lea.sflag [#allocation4], 1
    %19 = vsyncpa %s18, 0
    loop: start=0, step=1, limit=4
    $region2: #{match_module_forward.1} parent=1 // loop_pre_header
      _
    $region3: #{match_module_forward.1} parent=1 // loop_header
      %s21 = sphi 0, %s25
      %p22 = scmp.ge.s32.totalorder %s21, 4
      %s31 = sphi 0, %s33
      %s34 = sphi 0, %s31
      %s35 = sphi 0, %s34
      %s51 = sphi 0, %s35
      %s57 = sphi 0, %s59
      %s60 = sphi 0, %s57
      %s61 = sphi 0, %s60
      %s77 = sphi 0, %s61
      %s83 = sphi 0, %s85
      %s86 = sphi 0, %s83
      %s87 = sphi 0, %s86
      %s103 = sphi 0, %s87
      %s107 = sphi 0, %s107
      %s109 = sphi 0, %s107
      %s110 = sphi 0, %s109
      %s124 = sphi 0, %s110
      %s128 = sphi 0, %s128
      %s130 = sphi 0, %s128
      %s131 = sphi 0, %s130
      %s145 = sphi 0, %s131
      %s149 = sphi 0, %s149
      %s151 = sphi 0, %s149
      %s152 = sphi 0, %s151
      %s166 = sphi 0, %s152
      %s170 = sphi 0, %s170
      %s172 = sphi 0, %s170
      %s173 = sphi 0, %s172
      %s187 = sphi 0, %s173
      %s191 = sphi 0, %s191
      %s193 = sphi 0, %s191
      %s194 = sphi 0, %s193
      %s208 = sphi 0, %s194
      %s212 = sphi 0, %s212
      %s214 = sphi 0, %s212
      %s215 = sphi 0, %s214
      %s229 = sphi 0, %s215
      %s233 = sphi 0, %s233
      %s235 = sphi 0, %s233
      %s236 = sphi 0, %s235
      %s250 = sphi 0, %s236
      %s256 = sphi 0, %s258
      %s259 = sphi 0, %s256
      %s260 = sphi 0, %s259
      %s276 = sphi 0, %s260
    $region4: #{match_module_forward.1} parent=1 // loop_header_branch
      %24 = sbr.rel (%p22) target = $region8
    $region5: #{match_module_forward.1} parent=1 // loop_body
      %s26 = ssub.s32 %s21, 1
      %s27 = ssub.s32 %s21, 2
      %s28 = sadd.s32 %s21, 1
      %s29 = ssub.s32 %s21, %s28
      %p30 = scmp.eq.s32.totalorder %s29, 0
      %s32 = sadd.s32 %s31, 1
      %s33 = scalar_select %p30, %s31, %s32
      %p36 = pneg %p30
      %p37 = scmp.eq.s32.totalorder %s21, 1
      %p38 = por %p36, %p37
      %p39 = scmp.ne.s32.totalorder %s31, %s34
      %p40 = scmp.eq.s32.totalorder %s21, 0
      %p41 = por %p39, %p40
      %p42 = scmp.ne.s32.totalorder %s31, %s34
      %p43 = scmp.eq.s32.totalorder %s26, 1
      %p44 = por %p42, %p43
      %p45 = scmp.ne.s32.totalorder %s34, %s35
      %p46 = scmp.eq.s32.totalorder %s26, 0
      %p47 = por %p45, %p46
      %p48 = scmp.ne.s32.totalorder %s34, %s35
      %p49 = scmp.eq.s32.totalorder %s27, 1
      %p50 = por %p48, %p49
      %p52 = scmp.ne.s32.totalorder %s35, %s51
      %p53 = scmp.eq.s32.totalorder %s27, 0
      %p54 = por %p52, %p53
      %s55 = ssub.s32 %s21, %s28
      %p56 = scmp.eq.s32.totalorder %s55, 0
      %s58 = sadd.s32 %s57, 1
      %s59 = scalar_select %p56, %s57, %s58
      %p62 = pneg %p56
      %p63 = scmp.eq.s32.totalorder %s21, 1
      %p64 = por %p62, %p63
      %p65 = scmp.ne.s32.totalorder %s57, %s60
      %p66 = scmp.eq.s32.totalorder %s21, 0
      %p67 = por %p65, %p66
      %p68 = scmp.ne.s32.totalorder %s57, %s60
      %p69 = scmp.eq.s32.totalorder %s26, 1
      %p70 = por %p68, %p69
      %p71 = scmp.ne.s32.totalorder %s60, %s61
      %p72 = scmp.eq.s32.totalorder %s26, 0
      %p73 = por %p71, %p72
      %p74 = scmp.ne.s32.totalorder %s60, %s61
      %p75 = scmp.eq.s32.totalorder %s27, 1
      %p76 = por %p74, %p75
      %p78 = scmp.ne.s32.totalorder %s61, %s77
      %p79 = scmp.eq.s32.totalorder %s27, 0
      %p80 = por %p78, %p79
      %s81 = ssub.s32 %s21, %s28
      %p82 = scmp.eq.s32.totalorder %s81, 0
      %s84 = sadd.s32 %s83, 1
      %s85 = scalar_select %p82, %s83, %s84
      %p88 = pneg %p82
      %p89 = scmp.eq.s32.totalorder %s21, 1
      %p90 = por %p88, %p89
      %p91 = scmp.ne.s32.totalorder %s83, %s86
      %p92 = scmp.eq.s32.totalorder %s21, 0
      %p93 = por %p91, %p92
      %p94 = scmp.ne.s32.totalorder %s83, %s86
      %p95 = scmp.eq.s32.totalorder %s26, 1
      %p96 = por %p94, %p95
      %p97 = scmp.ne.s32.totalorder %s86, %s87
      %p98 = scmp.eq.s32.totalorder %s26, 0
      %p99 = por %p97, %p98
      %p100 = scmp.ne.s32.totalorder %s86, %s87
      %p101 = scmp.eq.s32.totalorder %s27, 1
      %p102 = por %p100, %p101
      %p104 = scmp.ne.s32.totalorder %s87, %s103
      %p105 = scmp.eq.s32.totalorder %s27, 0
      %p106 = por %p104, %p105
      %s108 = sadd.s32 %s107, 1
      %p111 = scmp.eq.s32.totalorder %s21, 1
      %p112 = scmp.ne.s32.totalorder %s107, %s109
      %p113 = scmp.eq.s32.totalorder %s21, 0
      %p114 = por %p112, %p113
      %p115 = scmp.ne.s32.totalorder %s107, %s109
      %p116 = scmp.eq.s32.totalorder %s26, 1
      %p117 = por %p115, %p116
      %p118 = scmp.ne.s32.totalorder %s109, %s110
      %p119 = scmp.eq.s32.totalorder %s26, 0
      %p120 = por %p118, %p119
      %p121 = scmp.ne.s32.totalorder %s109, %s110
      %p122 = scmp.eq.s32.totalorder %s27, 1
      %p123 = por %p121, %p122
      %p125 = scmp.ne.s32.totalorder %s110, %s124
      %p126 = scmp.eq.s32.totalorder %s27, 0
      %p127 = por %p125, %p126
      %s129 = sadd.s32 %s128, 1
      %p132 = scmp.eq.s32.totalorder %s21, 1
      %p133 = scmp.ne.s32.totalorder %s128, %s130
      %p134 = scmp.eq.s32.totalorder %s21, 0
      %p135 = por %p133, %p134
      %p136 = scmp.ne.s32.totalorder %s128, %s130
      %p137 = scmp.eq.s32.totalorder %s26, 1
      %p138 = por %p136, %p137
      %p139 = scmp.ne.s32.totalorder %s130, %s131
      %p140 = scmp.eq.s32.totalorder %s26, 0
      %p141 = por %p139, %p140
      %p142 = scmp.ne.s32.totalorder %s130, %s131
      %p143 = scmp.eq.s32.totalorder %s27, 1
      %p144 = por %p142, %p143
      %p146 = scmp.ne.s32.totalorder %s131, %s145
      %p147 = scmp.eq.s32.totalorder %s27, 0
      %p148 = por %p146, %p147
      %s150 = sadd.s32 %s149, 1
      %p153 = scmp.eq.s32.totalorder %s21, 1
      %p154 = scmp.ne.s32.totalorder %s149, %s151
      %p155 = scmp.eq.s32.totalorder %s21, 0
      %p156 = por %p154, %p155
      %p157 = scmp.ne.s32.totalorder %s149, %s151
      %p158 = scmp.eq.s32.totalorder %s26, 1
      %p159 = por %p157, %p158
      %p160 = scmp.ne.s32.totalorder %s151, %s152
      %p161 = scmp.eq.s32.totalorder %s26, 0
      %p162 = por %p160, %p161
      %p163 = scmp.ne.s32.totalorder %s151, %s152
      %p164 = scmp.eq.s32.totalorder %s27, 1
      %p165 = por %p163, %p164
      %p167 = scmp.ne.s32.totalorder %s152, %s166
      %p168 = scmp.eq.s32.totalorder %s27, 0
      %p169 = por %p167, %p168
      %s171 = sadd.s32 %s170, 1
      %p174 = scmp.eq.s32.totalorder %s21, 1
      %p175 = scmp.ne.s32.totalorder %s170, %s172
      %p176 = scmp.eq.s32.totalorder %s21, 0
      %p177 = por %p175, %p176
      %p178 = scmp.ne.s32.totalorder %s170, %s172
      %p179 = scmp.eq.s32.totalorder %s26, 1
      %p180 = por %p178, %p179
      %p181 = scmp.ne.s32.totalorder %s172, %s173
      %p182 = scmp.eq.s32.totalorder %s26, 0
      %p183 = por %p181, %p182
      %p184 = scmp.ne.s32.totalorder %s172, %s173
      %p185 = scmp.eq.s32.totalorder %s27, 1
      %p186 = por %p184, %p185
      %p188 = scmp.ne.s32.totalorder %s173, %s187
      %p189 = scmp.eq.s32.totalorder %s27, 0
      %p190 = por %p188, %p189
      %s192 = sadd.s32 %s191, 1
      %p195 = scmp.eq.s32.totalorder %s21, 1
      %p196 = scmp.ne.s32.totalorder %s191, %s193
      %p197 = scmp.eq.s32.totalorder %s21, 0
      %p198 = por %p196, %p197
      %p199 = scmp.ne.s32.totalorder %s191, %s193
      %p200 = scmp.eq.s32.totalorder %s26, 1
      %p201 = por %p199, %p200
      %p202 = scmp.ne.s32.totalorder %s193, %s194
      %p203 = scmp.eq.s32.totalorder %s26, 0
      %p204 = por %p202, %p203
      %p205 = scmp.ne.s32.totalorder %s193, %s194
      %p206 = scmp.eq.s32.totalorder %s27, 1
      %p207 = por %p205, %p206
      %p209 = scmp.ne.s32.totalorder %s194, %s208
      %p210 = scmp.eq.s32.totalorder %s27, 0
      %p211 = por %p209, %p210
      %s213 = sadd.s32 %s212, 1
      %p216 = scmp.eq.s32.totalorder %s21, 1
      %p217 = scmp.ne.s32.totalorder %s212, %s214
      %p218 = scmp.eq.s32.totalorder %s21, 0
      %p219 = por %p217, %p218
      %p220 = scmp.ne.s32.totalorder %s212, %s214
      %p221 = scmp.eq.s32.totalorder %s26, 1
      %p222 = por %p220, %p221
      %p223 = scmp.ne.s32.totalorder %s214, %s215
      %p224 = scmp.eq.s32.totalorder %s26, 0
      %p225 = por %p223, %p224
      %p226 = scmp.ne.s32.totalorder %s214, %s215
      %p227 = scmp.eq.s32.totalorder %s27, 1
      %p228 = por %p226, %p227
      %p230 = scmp.ne.s32.totalorder %s215, %s229
      %p231 = scmp.eq.s32.totalorder %s27, 0
      %p232 = por %p230, %p231
      %s234 = sadd.s32 %s233, 1
      %p237 = scmp.eq.s32.totalorder %s21, 1
      %p238 = scmp.ne.s32.totalorder %s233, %s235
      %p239 = scmp.eq.s32.totalorder %s21, 0
      %p240 = por %p238, %p239
      %p241 = scmp.ne.s32.totalorder %s233, %s235
      %p242 = scmp.eq.s32.totalorder %s26, 1
      %p243 = por %p241, %p242
      %p244 = scmp.ne.s32.totalorder %s235, %s236
      %p245 = scmp.eq.s32.totalorder %s26, 0
      %p246 = por %p244, %p245
      %p247 = scmp.ne.s32.totalorder %s235, %s236
      %p248 = scmp.eq.s32.totalorder %s27, 1
      %p249 = por %p247, %p248
      %p251 = scmp.ne.s32.totalorder %s236, %s250
      %p252 = scmp.eq.s32.totalorder %s27, 0
      %p253 = por %p251, %p252
      %s254 = ssub.s32 %s21, %s28
      %p255 = scmp.eq.s32.totalorder %s254, 0
      %s257 = sadd.s32 %s256, 1
      %s258 = scalar_select %p255, %s256, %s257
      %p261 = pneg %p255
      %p262 = scmp.eq.s32.totalorder %s21, 1
      %p263 = por %p261, %p262
      %p264 = scmp.ne.s32.totalorder %s256, %s259
      %p265 = scmp.eq.s32.totalorder %s21, 0
      %p266 = por %p264, %p265
      %p267 = scmp.ne.s32.totalorder %s256, %s259
      %p268 = scmp.eq.s32.totalorder %s26, 1
      %p269 = por %p267, %p268
      %p270 = scmp.ne.s32.totalorder %s259, %s260
      %p271 = scmp.eq.s32.totalorder %s26, 0
      %p272 = por %p270, %p271
      %p273 = scmp.ne.s32.totalorder %s259, %s260
      %p274 = scmp.eq.s32.totalorder %s27, 1
      %p275 = por %p273, %p274
      %p277 = scmp.ne.s32.totalorder %s260, %s276
      %p278 = scmp.eq.s32.totalorder %s27, 0
      %p279 = por %p277, %p278
      %p280 = scmp.le.s32.totalorder 1, %s21
      %p281 = scmp.lt.s32.totalorder %s21, 3
      %p282 = pnand %p280, %p281
      %p283 = pneg %p282
      // Predicated region
      $region9: #{match_module_forward.1} parent=5 // pred_check
        _
      $region10: #{match_module_forward.1} parent=5 // pred_check_branch
        %285 = sbr.rel (%p282) target = $region12
      $region11: #{match_module_forward.1} parent=5 // pred_region
        %s286 = ssub.s32 %s21, 1
        // Predicated region
        $region13: #{match_module_forward.1} parent=11 // pred_check
          %p287 = pneg %p120
        $region14: #{match_module_forward.1} parent=11 // pred_check_branch
          %289 = sbr.rel (%p287) target = $region16
        $region15: #{match_module_forward.1} parent=11 // pred_region
          _
        $region16: #{match_module_forward.1} parent=11 // pred_fallthru
          _
        // Predicated region
        $region17: #{match_module_forward.1} parent=11 // pred_check
          %p290 = pneg %p141
        $region18: #{match_module_forward.1} parent=11 // pred_check_branch
          %292 = sbr.rel (%p290) target = $region20
        $region19: #{match_module_forward.1} parent=11 // pred_region
          _
        $region20: #{match_module_forward.1} parent=11 // pred_fallthru
          _
        // Predicated region
        $region21: #{match_module_forward.1} parent=11 // pred_check
          %p293 = pneg %p162
        $region22: #{match_module_forward.1} parent=11 // pred_check_branch
          %295 = sbr.rel (%p293) target = $region24
        $region23: #{match_module_forward.1} parent=11 // pred_region
          _
        $region24: #{match_module_forward.1} parent=11 // pred_fallthru
          _
        // Predicated region
        $region25: #{match_module_forward.1} parent=11 // pred_check
          %p296 = pneg %p183
        $region26: #{match_module_forward.1} parent=11 // pred_check_branch
          %298 = sbr.rel (%p296) target = $region28
        $region27: #{match_module_forward.1} parent=11 // pred_region
          _
        $region28: #{match_module_forward.1} parent=11 // pred_fallthru
          _
        // Predicated region
        $region29: #{match_module_forward.1} parent=11 // pred_check
          %p299 = pneg %p204
        $region30: #{match_module_forward.1} parent=11 // pred_check_branch
          %301 = sbr.rel (%p299) target = $region32
        $region31: #{match_module_forward.1} parent=11 // pred_region
          _
        $region32: #{match_module_forward.1} parent=11 // pred_fallthru
          _
        // Predicated region
        $region33: #{match_module_forward.1} parent=11 // pred_check
          %p302 = pneg %p225
        $region34: #{match_module_forward.1} parent=11 // pred_check_branch
          %304 = sbr.rel (%p302) target = $region36
        $region35: #{match_module_forward.1} parent=11 // pred_region
          _
        $region36: #{match_module_forward.1} parent=11 // pred_fallthru
          _
        // Predicated region
        $region37: #{match_module_forward.1} parent=11 // pred_check
          %p305 = pneg %p246
        $region38: #{match_module_forward.1} parent=11 // pred_check_branch
          %307 = sbr.rel (%p305) target = $region40
        $region39: #{match_module_forward.1} parent=11 // pred_region
          _
        $region40: #{match_module_forward.1} parent=11 // pred_fallthru
          _
      $region12: #{match_module_forward.1} parent=5 // pred_fallthru
        _
      %p308 = scmp.lt.s32.totalorder %s21, 2
      // Predicated region
      $region41: #{match_module_forward.1} parent=5 // pred_check
        %p309 = pneg %p308
      $region42: #{match_module_forward.1} parent=5 // pred_check_branch
        %311 = sbr.rel (%p309) target = $region44
      $region43: #{match_module_forward.1} parent=5 // pred_region
        // Predicated region
        $region45: #{match_module_forward.1} parent=43 // pred_check
          %p312 = pneg %p41
        $region46: #{match_module_forward.1} parent=43 // pred_check_branch
          %314 = sbr.rel (%p312) target = $region48
        $region47: #{match_module_forward.1} parent=43 // pred_region
          %p315 = scmp.lt.s32.totalorder %s21, 1
          %s316 = scalar_select %p315, %s21, 1
          %s317 = smul.addr %s316, 32
          %s318 = smul.addr %s317, 4
          %s319 = scalar_lea.vmem %s0, %s318
        $region48: #{match_module_forward.1} parent=43 // pred_fallthru
          _
        // Predicated region
        $region49: #{match_module_forward.1} parent=43 // pred_check
          %p320 = pneg %p67
        $region50: #{match_module_forward.1} parent=43 // pred_check_branch
          %322 = sbr.rel (%p320) target = $region52
        $region51: #{match_module_forward.1} parent=43 // pred_region
          %p323 = scmp.lt.s32.totalorder %s21, 1
          %s324 = scalar_select %p323, %s21, 1
          %s325 = smul.addr %s324, 2
          %s326 = scalar_lea.vmem %s1, %s325
        $region52: #{match_module_forward.1} parent=43 // pred_fallthru
          _
        // Predicated region
        $region53: #{match_module_forward.1} parent=43 // pred_check
          %p327 = pneg %p93
        $region54: #{match_module_forward.1} parent=43 // pred_check_branch
          %329 = sbr.rel (%p327) target = $region56
        $region55: #{match_module_forward.1} parent=43 // pred_region
          %p330 = scmp.lt.s32.totalorder %s21, 1
          %s331 = scalar_select %p330, %s21, 1
          %s332 = smul.addr %s331, 16
          %s333 = smul.addr %s332, 8
          %s334 = scalar_lea.vmem %s2, %s333
        $region56: #{match_module_forward.1} parent=43 // pred_fallthru
          _
      $region44: #{match_module_forward.1} parent=5 // pred_fallthru
        _
      %p335 = scmp.le.s32.totalorder 1, %s21
      %p336 = scmp.lt.s32.totalorder %s21, 3
      %p337 = pnand %p335, %p336
      %p338 = pneg %p337
      // Predicated region
      $region57: #{match_module_forward.1} parent=5 // pred_check
        _
      $region58: #{match_module_forward.1} parent=5 // pred_check_branch
        %340 = sbr.rel (%p337) target = $region60
      $region59: #{match_module_forward.1} parent=5 // pred_region
        %s341 = ssub.s32 %s21, 1
        %p342 = scmp.lt.s32.totalorder %s26, 1
        %s343 = scalar_select %p342, %s26, 1
        %s344 = smul.addr %s343, 32
        %s345 = smul.addr %s344, 4
        %s346 = scalar_lea.vmem %s0, %s345
        %p347 = pneg %p47
        %p348 = pneg %p44
        %p349 = scmp.lt.s32.totalorder %s26, 1
        %s350 = scalar_select %p349, %s26, 1
        %s351 = smul.addr %s350, 2
        %s352 = scalar_lea.vmem %s1, %s351
        %p353 = pneg %p73
        %p354 = pneg %p70
        %p355 = scmp.lt.s32.totalorder %s26, 1
        %s356 = scalar_select %p355, %s26, 1
        %s357 = smul.addr %s356, 16
        %s358 = smul.addr %s357, 8
        %s359 = scalar_lea.vmem %s2, %s358
        %p360 = pneg %p99
        %p361 = pneg %p96
        %p362 = pneg %p120
        %p363 = pneg %p117
        %p364 = pneg %p141
        %p365 = pneg %p138
        %p366 = pneg %p162
        %p367 = pneg %p159
        %p368 = pneg %p183
        %p369 = pneg %p180
        %p370 = pneg %p204
        %p371 = pneg %p201
        %p372 = pneg %p225
        %p373 = pneg %p222
        %p374 = pneg %p246
        %p375 = pneg %p243
        %p376 = pneg %p272
        %p377 = pneg %p269
        %s378 = sand.u32 %s259, 1
        %s379 = scalar_lea.sflag [#allocation4], %s378
        %s380 = sand.u32 %s259, 1
        %s381 = scalar_lea.vmem [#allocation3], %s380
        %p382 = scmp.lt.s32.totalorder %s26, 1
        %s383 = scalar_select %p382, %s26, 1
        %s384 = smul.addr %s383, 32
        %s385 = smul.addr %s384, 4
        %s386 = scalar_lea.vmem %s0, %s385
        %p387 = scmp.lt.s32.totalorder %s26, 1
        %s388 = scalar_select %p387, %s26, 1
        %s389 = smul.addr %s388, 2
        %s390 = scalar_lea.vmem %s1, %s389
        %p391 = scmp.lt.s32.totalorder %s26, 1
        %s392 = scalar_select %p391, %s26, 1
        %s393 = smul.addr %s392, 16
        %s394 = smul.addr %s393, 8
        %s395 = scalar_lea.vmem %s2, %s394
        %v397 = vld [vmem:[%s386] sm:$0xf]
        %v398 = vld [vmem:[%s386 + $0x4] sm:$0xf]
        %v399 = vld [vmem:[%s386 + $0x8] sm:$0xf]
        %v400 = vld [vmem:[%s386 + $0xc] sm:$0xf]
        %v401 = vld [vmem:[%s386 + $0x10] sm:$0xf]
        %v402 = vld [vmem:[%s386 + $0x14] sm:$0xf]
        %v403 = vld [vmem:[%s386 + $0x18] sm:$0xf]
        %v404 = vld [vmem:[%s386 + $0x1c] sm:$0xf]
        %v405 = vld [vmem:[%s386 + $0x20] sm:$0xf]
        %v406 = vld [vmem:[%s386 + $0x24] sm:$0xf]
        %v407 = vld [vmem:[%s386 + $0x28] sm:$0xf]
        %v408 = vld [vmem:[%s386 + $0x2c] sm:$0xf]
        %v409 = vld [vmem:[%s386 + $0x30] sm:$0xf]
        %v410 = vld [vmem:[%s386 + $0x34] sm:$0xf]
        %v411 = vld [vmem:[%s386 + $0x38] sm:$0xf]
        %v412 = vld [vmem:[%s386 + $0x3c] sm:$0xf]
        %v413 = vld [vmem:[%s386 + $0x40] sm:$0xf]
        %v414 = vld [vmem:[%s386 + $0x44] sm:$0xf]
        %v415 = vld [vmem:[%s386 + $0x48] sm:$0xf]
        %v416 = vld [vmem:[%s386 + $0x4c] sm:$0xf]
        %v417 = vld [vmem:[%s386 + $0x50] sm:$0xf]
        %v418 = vld [vmem:[%s386 + $0x54] sm:$0xf]
        %v419 = vld [vmem:[%s386 + $0x58] sm:$0xf]
        %v420 = vld [vmem:[%s386 + $0x5c] sm:$0xf]
        %v421 = vld [vmem:[%s386 + $0x60] sm:$0xf]
        %v422 = vld [vmem:[%s386 + $0x64] sm:$0xf]
        %v423 = vld [vmem:[%s386 + $0x68] sm:$0xf]
        %v424 = vld [vmem:[%s386 + $0x6c] sm:$0xf]
        %v425 = vld [vmem:[%s386 + $0x70] sm:$0xf]
        %v426 = vld [vmem:[%s386 + $0x74] sm:$0xf]
        %v427 = vld [vmem:[%s386 + $0x78] sm:$0xf]
        %v428 = vld [vmem:[%s386 + $0x7c] sm:$0xf]
        %v429 = vld [vmem:[%s390] sm:$0x3]
        %v430 = vld [vmem:[%s395] sm:$0xff]
        %v431 = vld [vmem:[%s395 + $0x8] sm:$0xff]
        %v432 = vld [vmem:[%s395 + $0x10] sm:$0xff]
        %v433 = vld [vmem:[%s395 + $0x18] sm:$0xff]
        %v434 = vld [vmem:[%s395 + $0x20] sm:$0xff]
        %v435 = vld [vmem:[%s395 + $0x28] sm:$0xff]
        %v436 = vld [vmem:[%s395 + $0x30] sm:$0xff]
        %v437 = vld [vmem:[%s395 + $0x38] sm:$0xff]
        %v438 = vld [vmem:[%s395 + $0x40] sm:$0xff]
        %v439 = vld [vmem:[%s395 + $0x48] sm:$0xff]
        %v440 = vld [vmem:[%s395 + $0x50] sm:$0xff]
        %v441 = vld [vmem:[%s395 + $0x58] sm:$0xff]
        %v442 = vld [vmem:[%s395 + $0x60] sm:$0xff]
        %v443 = vld [vmem:[%s395 + $0x68] sm:$0xff]
        %v444 = vld [vmem:[%s395 + $0x70] sm:$0xff]
        %v445 = vld [vmem:[%s395 + $0x78] sm:$0xff]
        %v447 = vrot.slane %v429, 7
        %vm449 = vcmp.gt.f32.partialorder %v429, %v447
        %v450 = vsel %vm449, 1.0, 0.0
        %v451 = vld [vmem:[%s3] sm:$0xff]
        %v452 = vld [vmem:[%s3 + $0x8] sm:$0xff]
        %v453 = vld [vmem:[%s3 + $0x10] sm:$0xff]
        %v454 = vld [vmem:[%s3 + $0x18] sm:$0xff]
        %v455 = vld [vmem:[%s3 + $0x20] sm:$0xff]
        %v456 = vld [vmem:[%s3 + $0x28] sm:$0xff]
        %v457 = vld [vmem:[%s3 + $0x30] sm:$0xff]
        %v458 = vld [vmem:[%s3 + $0x38] sm:$0xff]
        %v459 = vld [vmem:[%s3 + $0x40] sm:$0xff]
        %v460 = vld [vmem:[%s3 + $0x48] sm:$0xff]
        %v461 = vld [vmem:[%s3 + $0x50] sm:$0xff]
        %v462 = vld [vmem:[%s3 + $0x58] sm:$0xff]
        %v463 = vld [vmem:[%s3 + $0x60] sm:$0xff]
        %v464 = vld [vmem:[%s3 + $0x68] sm:$0xff]
        %v465 = vld [vmem:[%s3 + $0x70] sm:$0xff]
        %v466 = vld [vmem:[%s3 + $0x78] sm:$0xff]
        %468 = vset.pattern.permute.xlu0 0
        %469 = vperm.xlu0 %468, %v430
        %v470 = vpop.permute.xlu0 %469
        %473 = vset.pattern.permute.xlu0 0
        %474 = vperm.xlu0 %473, %v431
        %v475 = vpop.permute.xlu0 %474
        %478 = vset.pattern.permute.xlu0 0
        %479 = vperm.xlu0 %478, %v432
        %v480 = vpop.permute.xlu0 %479
        %483 = vset.pattern.permute.xlu0 0
        %484 = vperm.xlu0 %483, %v433
        %v485 = vpop.permute.xlu0 %484
        %488 = vset.pattern.permute.xlu0 0
        %489 = vperm.xlu0 %488, %v434
        %v490 = vpop.permute.xlu0 %489
        %493 = vset.pattern.permute.xlu0 0
        %494 = vperm.xlu0 %493, %v435
        %v495 = vpop.permute.xlu0 %494
        %498 = vset.pattern.permute.xlu0 0
        %499 = vperm.xlu0 %498, %v436
        %v500 = vpop.permute.xlu0 %499
        %503 = vset.pattern.permute.xlu0 0
        %504 = vperm.xlu0 %503, %v437
        %v505 = vpop.permute.xlu0 %504
        %508 = vset.pattern.permute.xlu0 0
        %509 = vperm.xlu0 %508, %v438
        %v510 = vpop.permute.xlu0 %509
        %513 = vset.pattern.permute.xlu0 0
        %514 = vperm.xlu0 %513, %v439
        %v515 = vpop.permute.xlu0 %514
        %518 = vset.pattern.permute.xlu0 0
        %519 = vperm.xlu0 %518, %v440
        %v520 = vpop.permute.xlu0 %519
        %523 = vset.pattern.permute.xlu0 0
        %524 = vperm.xlu0 %523, %v441
        %v525 = vpop.permute.xlu0 %524
        %528 = vset.pattern.permute.xlu0 0
        %529 = vperm.xlu0 %528, %v442
        %v530 = vpop.permute.xlu0 %529
        %533 = vset.pattern.permute.xlu0 0
        %534 = vperm.xlu0 %533, %v443
        %v535 = vpop.permute.xlu0 %534
        %538 = vset.pattern.permute.xlu0 0
        %539 = vperm.xlu0 %538, %v444
        %v540 = vpop.permute.xlu0 %539
        %543 = vset.pattern.permute.xlu0 0
        %544 = vperm.xlu0 %543, %v445
        %v545 = vpop.permute.xlu0 %544
        %v563 = vunpack.c.l.b16 %v451
        %v564 = vunpack.c.h.b16 %v451
        %v565 = vunpack.c.l.b16 %v452
        %v566 = vunpack.c.h.b16 %v452
        %v567 = vunpack.c.l.b16 %v453
        %v568 = vunpack.c.h.b16 %v453
        %v569 = vunpack.c.l.b16 %v454
        %v570 = vunpack.c.h.b16 %v454
        %v571 = vunpack.c.l.b16 %v455
        %v572 = vunpack.c.h.b16 %v455
        %v573 = vunpack.c.l.b16 %v456
        %v574 = vunpack.c.h.b16 %v456
        %v575 = vunpack.c.l.b16 %v457
        %v576 = vunpack.c.h.b16 %v457
        %v577 = vunpack.c.l.b16 %v458
        %v578 = vunpack.c.h.b16 %v458
        %v579 = vunpack.c.l.b16 %v459
        %v580 = vunpack.c.h.b16 %v459
        %v581 = vunpack.c.l.b16 %v460
        %v582 = vunpack.c.h.b16 %v460
        %v583 = vunpack.c.l.b16 %v461
        %v584 = vunpack.c.h.b16 %v461
        %v585 = vunpack.c.l.b16 %v462
        %v586 = vunpack.c.h.b16 %v462
        %v587 = vunpack.c.l.b16 %v463
        %v588 = vunpack.c.h.b16 %v463
        %v589 = vunpack.c.l.b16 %v464
        %v590 = vunpack.c.h.b16 %v464
        %v591 = vunpack.c.l.b16 %v465
        %v592 = vunpack.c.h.b16 %v465
        %v593 = vunpack.c.l.b16 %v466
        %v594 = vunpack.c.h.b16 %v466
        %v595 = vpack.c.b16 %v565, %v563
        %v596 = vpack.c.b16 %v566, %v564
        %v597 = vpack.c.b16 %v569, %v567
        %v598 = vpack.c.b16 %v570, %v568
        %v599 = vpack.c.b16 %v573, %v571
        %v600 = vpack.c.b16 %v574, %v572
        %v601 = vpack.c.b16 %v577, %v575
        %v602 = vpack.c.b16 %v578, %v576
        %v603 = vpack.c.b16 %v581, %v579
        %v604 = vpack.c.b16 %v582, %v580
        %v605 = vpack.c.b16 %v585, %v583
        %v606 = vpack.c.b16 %v586, %v584
        %v607 = vpack.c.b16 %v589, %v587
        %v608 = vpack.c.b16 %v590, %v588
        %v609 = vpack.c.b16 %v593, %v591
        %v610 = vpack.c.b16 %v594, %v592
        %v659 = vunpack.c.l.b16 %v397
        %v660 = vunpack.c.l.b16 %v398
        %v661 = vunpack.c.l.b16 %v399
        %v662 = vunpack.c.l.b16 %v400
        %v663 = vunpack.c.l.b16 %v401
        %v664 = vunpack.c.l.b16 %v402
        %v665 = vunpack.c.l.b16 %v403
        %v666 = vunpack.c.l.b16 %v404
        %v667 = vunpack.c.l.b16 %v405
        %v668 = vunpack.c.l.b16 %v406
        %v669 = vunpack.c.l.b16 %v407
        %v670 = vunpack.c.l.b16 %v408
        %v671 = vunpack.c.l.b16 %v409
        %v672 = vunpack.c.l.b16 %v410
        %v673 = vunpack.c.l.b16 %v411
        %v674 = vunpack.c.l.b16 %v412
        %v675 = vunpack.c.l.b16 %v413
        %v676 = vunpack.c.l.b16 %v414
        %v677 = vunpack.c.l.b16 %v415
        %v678 = vunpack.c.l.b16 %v416
        %v679 = vunpack.c.l.b16 %v417
        %v680 = vunpack.c.l.b16 %v418
        %v681 = vunpack.c.l.b16 %v419
        %v682 = vunpack.c.l.b16 %v420
        %v683 = vunpack.c.l.b16 %v421
        %v684 = vunpack.c.l.b16 %v422
        %v685 = vunpack.c.l.b16 %v423
        %v686 = vunpack.c.l.b16 %v424
        %v687 = vunpack.c.l.b16 %v425
        %v688 = vunpack.c.l.b16 %v426
        %v689 = vunpack.c.l.b16 %v427
        %v690 = vunpack.c.l.b16 %v428
        %v691 = vpack.c.b16 %v660, %v659
        %v692 = vpack.c.b16 %v662, %v661
        %v693 = vpack.c.b16 %v664, %v663
        %v694 = vpack.c.b16 %v666, %v665
        %v695 = vpack.c.b16 %v668, %v667
        %v696 = vpack.c.b16 %v670, %v669
        %v697 = vpack.c.b16 %v672, %v671
        %v698 = vpack.c.b16 %v674, %v673
        %v699 = vpack.c.b16 %v676, %v675
        %v700 = vpack.c.b16 %v678, %v677
        %v701 = vpack.c.b16 %v680, %v679
        %v702 = vpack.c.b16 %v682, %v681
        %v703 = vpack.c.b16 %v684, %v683
        %v704 = vpack.c.b16 %v686, %v685
        %v705 = vpack.c.b16 %v688, %v687
        %v706 = vpack.c.b16 %v690, %v689
        %723 = vmatprep.subr.bf16.mxu0 0
        %724 = vmatpush1.bf16.msra.mxu0 %v698
        %725 = vmatprep.subr.bf16.mxu0 0
        %726 = vmatpush1.bf16.msra.mxu0 %v697
        %727 = vmatprep.subr.bf16.mxu0 0
        %728 = vmatpush1.bf16.msra.mxu0 %v696
        %729 = vmatprep.subr.bf16.mxu0 0
        %730 = vmatpush1.bf16.msra.mxu0 %v695
        %731 = vmatprep.subr.bf16.mxu0 0
        %732 = vmatpush1.bf16.msra.mxu0 %v694
        %733 = vmatprep.subr.bf16.mxu0 0
        %734 = vmatpush1.bf16.msra.mxu0 %v693
        %735 = vmatprep.subr.bf16.mxu0 0
        %736 = vmatpush1.bf16.msra.mxu0 %v692
        %737 = vmatprep.subr.bf16.mxu0 0
        %738 = vmatpush1.bf16.msra.mxu0 %v691
        %739 = vmatprep.subr.bf16.mxu0 0
        %740 = vmatpush2.bf16.msra.mxu0 %v706
        %741 = vmatprep.subr.bf16.mxu0 0
        %742 = vmatpush2.bf16.msra.mxu0 %v705
        %743 = vmatprep.subr.bf16.mxu0 0
        %744 = vmatpush2.bf16.msra.mxu0 %v704
        %745 = vmatprep.subr.bf16.mxu0 0
        %746 = vmatpush2.bf16.msra.mxu0 %v703
        %747 = vmatprep.subr.bf16.mxu0 0
        %748 = vmatpush2.bf16.msra.mxu0 %v702
        %749 = vmatprep.subr.bf16.mxu0 0
        %750 = vmatpush2.bf16.msra.mxu0 %v701
        %751 = vmatprep.subr.bf16.mxu0 0
        %752 = vmatpush2.bf16.msra.mxu0 %v700
        %753 = vmatprep.subr.bf16.mxu0 0
        %754 = vmatpush2.bf16.msra.mxu0 %v699
        %755 = vmatprep.mubr.bf16.mxu0 %v596
        %756 = vmatmul.mubr.bf16.gmra.mxu0 %v595
        %v757 = vpop.f32.mrf.mxu0
        %v758 = vadd.f32 %v470, %v757
        %v759 = vpop.f32.mrf.mxu0
        %v760 = vpop.f32.mrf.mxu0
        %v761 = vadd.f32 %v475, %v760
        %v762 = vpop.f32.mrf.mxu0
        %763 = vmatprep.mubr.bf16.mxu0 %v598
        %764 = vmatmul.mubr.bf16.gmra.mxu0 %v597
        %v765 = vpop.f32.mrf.mxu0
        %v766 = vadd.f32 %v480, %v765
        %v767 = vpop.f32.mrf.mxu0
        %v768 = vpop.f32.mrf.mxu0
        %v769 = vadd.f32 %v485, %v768
        %v770 = vpop.f32.mrf.mxu0
        %771 = vmatprep.mubr.bf16.mxu0 %v600
        %772 = vmatmul.mubr.bf16.gmra.mxu0 %v599
        %v773 = vpop.f32.mrf.mxu0
        %v774 = vadd.f32 %v490, %v773
        %v775 = vpop.f32.mrf.mxu0
        %v776 = vpop.f32.mrf.mxu0
        %v777 = vadd.f32 %v495, %v776
        %v778 = vpop.f32.mrf.mxu0
        %779 = vmatprep.mubr.bf16.mxu0 %v602
        %780 = vmatmul.mubr.bf16.gmra.mxu0 %v601
        %v781 = vpop.f32.mrf.mxu0
        %v782 = vadd.f32 %v500, %v781
        %v783 = vpop.f32.mrf.mxu0
        %v784 = vpop.f32.mrf.mxu0
        %v785 = vadd.f32 %v505, %v784
        %v786 = vpop.f32.mrf.mxu0
        %787 = vmatprep.mubr.bf16.mxu0 %v604
        %788 = vmatmul.mubr.bf16.gmra.mxu0 %v603
        %v789 = vpop.f32.mrf.mxu0
        %v790 = vadd.f32 %v510, %v789
        %v791 = vpop.f32.mrf.mxu0
        %v792 = vpop.f32.mrf.mxu0
        %v793 = vadd.f32 %v515, %v792
        %v794 = vpop.f32.mrf.mxu0
        %795 = vmatprep.mubr.bf16.mxu0 %v606
        %796 = vmatmul.mubr.bf16.gmra.mxu0 %v605
        %v797 = vpop.f32.mrf.mxu0
        %v798 = vadd.f32 %v520, %v797
        %v799 = vpop.f32.mrf.mxu0
        %v800 = vpop.f32.mrf.mxu0
        %v801 = vadd.f32 %v525, %v800
        %v802 = vpop.f32.mrf.mxu0
        %803 = vmatprep.mubr.bf16.mxu0 %v608
        %804 = vmatmul.mubr.bf16.gmra.mxu0 %v607
        %v805 = vpop.f32.mrf.mxu0
        %v806 = vadd.f32 %v530, %v805
        %v807 = vpop.f32.mrf.mxu0
        %v808 = vpop.f32.mrf.mxu0
        %v809 = vadd.f32 %v535, %v808
        %v810 = vpop.f32.mrf.mxu0
        %811 = vmatprep.mubr.bf16.mxu0 %v610
        %812 = vmatmul.mubr.bf16.gmra.mxu0 %v609
        %v813 = vpop.f32.mrf.mxu0
        %v814 = vadd.f32 %v540, %v813
        %v815 = vpop.f32.mrf.mxu0
        %v816 = vpop.f32.mrf.mxu0
        %v817 = vadd.f32 %v545, %v816
        %v818 = vpop.f32.mrf.mxu0
        %819 = vdwg.mxu0
        %v820 = vmax.f32 %v758, 0.0
        %v821 = vmax.f32 %v761, 0.0
        %v822 = vmax.f32 %v766, 0.0
        %v823 = vmax.f32 %v769, 0.0
        %v824 = vmax.f32 %v774, 0.0
        %v825 = vmax.f32 %v777, 0.0
        %v826 = vmax.f32 %v782, 0.0
        %v827 = vmax.f32 %v785, 0.0
        %v828 = vmax.f32 %v790, 0.0
        %v829 = vmax.f32 %v793, 0.0
        %v830 = vmax.f32 %v798, 0.0
        %v831 = vmax.f32 %v801, 0.0
        %v832 = vmax.f32 %v806, 0.0
        %v833 = vmax.f32 %v809, 0.0
        %v834 = vmax.f32 %v814, 0.0
        %v835 = vmax.f32 %v817, 0.0
        %v836 = vlaneseq
        %v837 = vshrl.u32 %v836, 7
        %v838 = vsub.s32 1, %v837
        %v839 = vrot.slane %v450, %v838
        %v840 = vmul.f32 %v820, %v839
        %v841 = vmul.f32 %v821, %v839
        %v842 = vmul.f32 %v822, %v839
        %v843 = vmul.f32 %v823, %v839
        %v844 = vmul.f32 %v824, %v839
        %v845 = vmul.f32 %v825, %v839
        %v846 = vmul.f32 %v826, %v839
        %v847 = vmul.f32 %v827, %v839
        %v848 = vmul.f32 %v828, %v839
        %v849 = vmul.f32 %v829, %v839
        %v850 = vmul.f32 %v830, %v839
        %v851 = vmul.f32 %v831, %v839
        %v852 = vmul.f32 %v832, %v839
        %v853 = vmul.f32 %v833, %v839
        %v854 = vmul.f32 %v834, %v839
        %v855 = vmul.f32 %v835, %v839
        %v856 = vld [vmem:[%s4] sm:$0xf]
        %v857 = vld [vmem:[%s4 + $0x4] sm:$0xf]
        %v858 = vld [vmem:[%s4 + $0x8] sm:$0xf]
        %v859 = vld [vmem:[%s4 + $0xc] sm:$0xf]
        %v860 = vld [vmem:[%s4 + $0x10] sm:$0xf]
        %v861 = vld [vmem:[%s4 + $0x14] sm:$0xf]
        %v862 = vld [vmem:[%s4 + $0x18] sm:$0xf]
        %v863 = vld [vmem:[%s4 + $0x1c] sm:$0xf]
        %v864 = vld [vmem:[%s4 + $0x20] sm:$0xf]
        %v865 = vld [vmem:[%s4 + $0x24] sm:$0xf]
        %v866 = vld [vmem:[%s4 + $0x28] sm:$0xf]
        %v867 = vld [vmem:[%s4 + $0x2c] sm:$0xf]
        %v868 = vld [vmem:[%s4 + $0x30] sm:$0xf]
        %v869 = vld [vmem:[%s4 + $0x34] sm:$0xf]
        %v870 = vld [vmem:[%s4 + $0x38] sm:$0xf]
        %v871 = vld [vmem:[%s4 + $0x3c] sm:$0xf]
        %v872 = vpack.c.bf16 %v841, %v840
        %v873 = vpack.c.bf16 %v843, %v842
        %v874 = vpack.c.bf16 %v845, %v844
        %v875 = vpack.c.bf16 %v847, %v846
        %v876 = vpack.c.bf16 %v849, %v848
        %v877 = vpack.c.bf16 %v851, %v850
        %v878 = vpack.c.bf16 %v853, %v852
        %v879 = vpack.c.bf16 %v855, %v854
        %v880 = vld [vmem:[%s5] sm:$0xff]
        %v881 = vld [vmem:[%s5 + $0x8] sm:$0xff]
        %v882 = vld [vmem:[%s5 + $0x10] sm:$0xff]
        %v883 = vld [vmem:[%s5 + $0x18] sm:$0xff]
        %v884 = vld [vmem:[%s5 + $0x20] sm:$0xff]
        %v885 = vld [vmem:[%s5 + $0x28] sm:$0xff]
        %v886 = vld [vmem:[%s5 + $0x30] sm:$0xff]
        %v887 = vld [vmem:[%s5 + $0x38] sm:$0xff]
        %v888 = vld [vmem:[%s5 + $0x40] sm:$0xff]
        %v889 = vld [vmem:[%s5 + $0x48] sm:$0xff]
        %v890 = vld [vmem:[%s5 + $0x50] sm:$0xff]
        %v891 = vld [vmem:[%s5 + $0x58] sm:$0xff]
        %v892 = vld [vmem:[%s5 + $0x60] sm:$0xff]
        %v893 = vld [vmem:[%s5 + $0x68] sm:$0xff]
        %v894 = vld [vmem:[%s5 + $0x70] sm:$0xff]
        %v895 = vld [vmem:[%s5 + $0x78] sm:$0xff]
        %897 = vset.pattern.permute.xlu0 0
        %898 = vperm.xlu0 %897, %v880
        %v899 = vpop.permute.xlu0 %898
        %902 = vset.pattern.permute.xlu0 0
        %903 = vperm.xlu0 %902, %v881
        %v904 = vpop.permute.xlu0 %903
        %907 = vset.pattern.permute.xlu0 0
        %908 = vperm.xlu0 %907, %v882
        %v909 = vpop.permute.xlu0 %908
        %912 = vset.pattern.permute.xlu0 0
        %913 = vperm.xlu0 %912, %v883
        %v914 = vpop.permute.xlu0 %913
        %917 = vset.pattern.permute.xlu0 0
        %918 = vperm.xlu0 %917, %v884
        %v919 = vpop.permute.xlu0 %918
        %922 = vset.pattern.permute.xlu0 0
        %923 = vperm.xlu0 %922, %v885
        %v924 = vpop.permute.xlu0 %923
        %927 = vset.pattern.permute.xlu0 0
        %928 = vperm.xlu0 %927, %v886
        %v929 = vpop.permute.xlu0 %928
        %932 = vset.pattern.permute.xlu0 0
        %933 = vperm.xlu0 %932, %v887
        %v934 = vpop.permute.xlu0 %933
        %937 = vset.pattern.permute.xlu0 0
        %938 = vperm.xlu0 %937, %v888
        %v939 = vpop.permute.xlu0 %938
        %942 = vset.pattern.permute.xlu0 0
        %943 = vperm.xlu0 %942, %v889
        %v944 = vpop.permute.xlu0 %943
        %947 = vset.pattern.permute.xlu0 0
        %948 = vperm.xlu0 %947, %v890
        %v949 = vpop.permute.xlu0 %948
        %952 = vset.pattern.permute.xlu0 0
        %953 = vperm.xlu0 %952, %v891
        %v954 = vpop.permute.xlu0 %953
        %957 = vset.pattern.permute.xlu0 0
        %958 = vperm.xlu0 %957, %v892
        %v959 = vpop.permute.xlu0 %958
        %962 = vset.pattern.permute.xlu0 0
        %963 = vperm.xlu0 %962, %v893
        %v964 = vpop.permute.xlu0 %963
        %967 = vset.pattern.permute.xlu0 0
        %968 = vperm.xlu0 %967, %v894
        %v969 = vpop.permute.xlu0 %968
        %972 = vset.pattern.permute.xlu0 0
        %973 = vperm.xlu0 %972, %v895
        %v974 = vpop.permute.xlu0 %973
        %v992 = vunpack.c.l.b16 %v856
        %v993 = vunpack.c.l.b16 %v857
        %v994 = vunpack.c.l.b16 %v858
        %v995 = vunpack.c.l.b16 %v859
        %v996 = vunpack.c.l.b16 %v860
        %v997 = vunpack.c.l.b16 %v861
        %v998 = vunpack.c.l.b16 %v862
        %v999 = vunpack.c.l.b16 %v863
        %v1000 = vunpack.c.l.b16 %v864
        %v1001 = vunpack.c.l.b16 %v865
        %v1002 = vunpack.c.l.b16 %v866
        %v1003 = vunpack.c.l.b16 %v867
        %v1004 = vunpack.c.l.b16 %v868
        %v1005 = vunpack.c.l.b16 %v869
        %v1006 = vunpack.c.l.b16 %v870
        %v1007 = vunpack.c.l.b16 %v871
        %v1008 = vpack.c.b16 %v993, %v992
        %v1009 = vpack.c.b16 %v995, %v994
        %v1010 = vpack.c.b16 %v997, %v996
        %v1011 = vpack.c.b16 %v999, %v998
        %v1012 = vpack.c.b16 %v1001, %v1000
        %v1013 = vpack.c.b16 %v1003, %v1002
        %v1014 = vpack.c.b16 %v1005, %v1004
        %v1015 = vpack.c.b16 %v1007, %v1006
        %1024 = vmatprep.subr.bf16.mxu0 0
        %1025 = vmatpush1.bf16.msra.mxu0 %v879
        %1026 = vmatprep.subr.bf16.mxu0 0
        %1027 = vmatpush1.bf16.msra.mxu0 %v878
        %1028 = vmatprep.subr.bf16.mxu0 0
        %1029 = vmatpush1.bf16.msra.mxu0 %v877
        %1030 = vmatprep.subr.bf16.mxu0 0
        %1031 = vmatpush1.bf16.msra.mxu0 %v876
        %1032 = vmatprep.subr.bf16.mxu0 0
        %1033 = vmatpush1.bf16.msra.mxu0 %v875
        %1034 = vmatprep.subr.bf16.mxu0 0
        %1035 = vmatpush1.bf16.msra.mxu0 %v874
        %1036 = vmatprep.subr.bf16.mxu0 0
        %1037 = vmatpush1.bf16.msra.mxu0 %v873
        %1038 = vmatprep.subr.bf16.mxu0 0
        %1039 = vmatpush1.bf16.msra.mxu0 %v872
        %1040 = vmatprep.subr.bf16.mxu0 0
        %1041 = vmatpush2.bf16.msra.mxu0 0
        %1042 = vmatprep.subr.bf16.mxu0 0
        %1043 = vmatpush2.bf16.msra.mxu0 0
        %1044 = vmatprep.subr.bf16.mxu0 0
        %1045 = vmatpush2.bf16.msra.mxu0 0
        %1046 = vmatprep.subr.bf16.mxu0 0
        %1047 = vmatpush2.bf16.msra.mxu0 0
        %1048 = vmatprep.subr.bf16.mxu0 0
        %1049 = vmatpush2.bf16.msra.mxu0 0
        %1050 = vmatprep.subr.bf16.mxu0 0
        %1051 = vmatpush2.bf16.msra.mxu0 0
        %1052 = vmatprep.subr.bf16.mxu0 0
        %1053 = vmatpush2.bf16.msra.mxu0 0
        %1054 = vmatprep.subr.bf16.mxu0 0
        %1055 = vmatpush2.bf16.msra.mxu0 0
        %1056 = vmatprep.mubr.bf16.mxu0 0
        %1057 = vmatmul.mubr.bf16.gmra.mxu0 %v1008
        %v1058 = vpop.f32.mrf.mxu0
        %v1059 = vadd.f32 %v899, %v1058
        %v1060 = vpop.f32.mrf.mxu0
        %v1061 = vpop.f32.mrf.mxu0
        %v1062 = vadd.f32 %v904, %v1061
        %v1063 = vpop.f32.mrf.mxu0
        %1064 = vmatprep.mubr.bf16.mxu0 0
        %1065 = vmatmul.mubr.bf16.gmra.mxu0 %v1009
        %v1066 = vpop.f32.mrf.mxu0
        %v1067 = vadd.f32 %v909, %v1066
        %v1068 = vpop.f32.mrf.mxu0
        %v1069 = vpop.f32.mrf.mxu0
        %v1070 = vadd.f32 %v914, %v1069
        %v1071 = vpop.f32.mrf.mxu0
        %1072 = vmatprep.mubr.bf16.mxu0 0
        %1073 = vmatmul.mubr.bf16.gmra.mxu0 %v1010
        %v1074 = vpop.f32.mrf.mxu0
        %v1075 = vadd.f32 %v919, %v1074
        %v1076 = vpop.f32.mrf.mxu0
        %v1077 = vpop.f32.mrf.mxu0
        %v1078 = vadd.f32 %v924, %v1077
        %v1079 = vpop.f32.mrf.mxu0
        %1080 = vmatprep.mubr.bf16.mxu0 0
        %1081 = vmatmul.mubr.bf16.gmra.mxu0 %v1011
        %v1082 = vpop.f32.mrf.mxu0
        %v1083 = vadd.f32 %v929, %v1082
        %v1084 = vpop.f32.mrf.mxu0
        %v1085 = vpop.f32.mrf.mxu0
        %v1086 = vadd.f32 %v934, %v1085
        %v1087 = vpop.f32.mrf.mxu0
        %1088 = vmatprep.mubr.bf16.mxu0 0
        %1089 = vmatmul.mubr.bf16.gmra.mxu0 %v1012
        %v1090 = vpop.f32.mrf.mxu0
        %v1091 = vadd.f32 %v939, %v1090
        %v1092 = vpop.f32.mrf.mxu0
        %v1093 = vpop.f32.mrf.mxu0
        %v1094 = vadd.f32 %v944, %v1093
        %v1095 = vpop.f32.mrf.mxu0
        %1096 = vmatprep.mubr.bf16.mxu0 0
        %1097 = vmatmul.mubr.bf16.gmra.mxu0 %v1013
        %v1098 = vpop.f32.mrf.mxu0
        %v1099 = vadd.f32 %v949, %v1098
        %v1100 = vpop.f32.mrf.mxu0
        %v1101 = vpop.f32.mrf.mxu0
        %v1102 = vadd.f32 %v954, %v1101
        %v1103 = vpop.f32.mrf.mxu0
        %1104 = vmatprep.mubr.bf16.mxu0 0
        %1105 = vmatmul.mubr.bf16.gmra.mxu0 %v1014
        %v1106 = vpop.f32.mrf.mxu0
        %v1107 = vadd.f32 %v959, %v1106
        %v1108 = vpop.f32.mrf.mxu0
        %v1109 = vpop.f32.mrf.mxu0
        %v1110 = vadd.f32 %v964, %v1109
        %v1111 = vpop.f32.mrf.mxu0
        %1112 = vmatprep.mubr.bf16.mxu0 0
        %1113 = vmatmul.mubr.bf16.gmra.mxu0 %v1015
        %v1114 = vpop.f32.mrf.mxu0
        %v1115 = vadd.f32 %v969, %v1114
        %v1116 = vpop.f32.mrf.mxu0
        %v1117 = vpop.f32.mrf.mxu0
        %v1118 = vadd.f32 %v974, %v1117
        %v1119 = vpop.f32.mrf.mxu0
        %1120 = vdwg.mxu0
        %v1121 = vmax.f32 %v1059, 0.0
        %v1122 = vmax.f32 %v1062, 0.0
        %v1123 = vmax.f32 %v1067, 0.0
        %v1124 = vmax.f32 %v1070, 0.0
        %v1125 = vmax.f32 %v1075, 0.0
        %v1126 = vmax.f32 %v1078, 0.0
        %v1127 = vmax.f32 %v1083, 0.0
        %v1128 = vmax.f32 %v1086, 0.0
        %v1129 = vmax.f32 %v1091, 0.0
        %v1130 = vmax.f32 %v1094, 0.0
        %v1131 = vmax.f32 %v1099, 0.0
        %v1132 = vmax.f32 %v1102, 0.0
        %v1133 = vmax.f32 %v1107, 0.0
        %v1134 = vmax.f32 %v1110, 0.0
        %v1135 = vmax.f32 %v1115, 0.0
        %v1136 = vmax.f32 %v1118, 0.0
        %v1137 = vld [vmem:[%s6] sm:$0xf]
        %v1138 = vld [vmem:[%s6 + $0x4] sm:$0xf]
        %v1139 = vld [vmem:[%s6 + $0x8] sm:$0xf]
        %v1140 = vld [vmem:[%s6 + $0xc] sm:$0xf]
        %v1141 = vld [vmem:[%s6 + $0x10] sm:$0xf]
        %v1142 = vld [vmem:[%s6 + $0x14] sm:$0xf]
        %v1143 = vld [vmem:[%s6 + $0x18] sm:$0xf]
        %v1144 = vld [vmem:[%s6 + $0x1c] sm:$0xf]
        %v1145 = vld [vmem:[%s6 + $0x20] sm:$0xf]
        %v1146 = vld [vmem:[%s6 + $0x24] sm:$0xf]
        %v1147 = vld [vmem:[%s6 + $0x28] sm:$0xf]
        %v1148 = vld [vmem:[%s6 + $0x2c] sm:$0xf]
        %v1149 = vld [vmem:[%s6 + $0x30] sm:$0xf]
        %v1150 = vld [vmem:[%s6 + $0x34] sm:$0xf]
        %v1151 = vld [vmem:[%s6 + $0x38] sm:$0xf]
        %v1152 = vld [vmem:[%s6 + $0x3c] sm:$0xf]
        %v1153 = vpack.c.bf16 %v1122, %v1121
        %v1154 = vpack.c.bf16 %v1124, %v1123
        %v1155 = vpack.c.bf16 %v1126, %v1125
        %v1156 = vpack.c.bf16 %v1128, %v1127
        %v1157 = vpack.c.bf16 %v1130, %v1129
        %v1158 = vpack.c.bf16 %v1132, %v1131
        %v1159 = vpack.c.bf16 %v1134, %v1133
        %v1160 = vpack.c.bf16 %v1136, %v1135
        %v1161 = vld [vmem:[%s7] sm:$0xff]
        %v1162 = vld [vmem:[%s7 + $0x8] sm:$0xff]
        %v1163 = vld [vmem:[%s7 + $0x10] sm:$0xff]
        %v1164 = vld [vmem:[%s7 + $0x18] sm:$0xff]
        %v1165 = vld [vmem:[%s7 + $0x20] sm:$0xff]
        %v1166 = vld [vmem:[%s7 + $0x28] sm:$0xff]
        %v1167 = vld [vmem:[%s7 + $0x30] sm:$0xff]
        %v1168 = vld [vmem:[%s7 + $0x38] sm:$0xff]
        %v1169 = vld [vmem:[%s7 + $0x40] sm:$0xff]
        %v1170 = vld [vmem:[%s7 + $0x48] sm:$0xff]
        %v1171 = vld [vmem:[%s7 + $0x50] sm:$0xff]
        %v1172 = vld [vmem:[%s7 + $0x58] sm:$0xff]
        %v1173 = vld [vmem:[%s7 + $0x60] sm:$0xff]
        %v1174 = vld [vmem:[%s7 + $0x68] sm:$0xff]
        %v1175 = vld [vmem:[%s7 + $0x70] sm:$0xff]
        %v1176 = vld [vmem:[%s7 + $0x78] sm:$0xff]
        %1178 = vset.pattern.permute.xlu0 0
        %1179 = vperm.xlu0 %1178, %v1161
        %v1180 = vpop.permute.xlu0 %1179
        %1183 = vset.pattern.permute.xlu0 0
        %1184 = vperm.xlu0 %1183, %v1162
        %v1185 = vpop.permute.xlu0 %1184
        %1188 = vset.pattern.permute.xlu0 0
        %1189 = vperm.xlu0 %1188, %v1163
        %v1190 = vpop.permute.xlu0 %1189
        %1193 = vset.pattern.permute.xlu0 0
        %1194 = vperm.xlu0 %1193, %v1164
        %v1195 = vpop.permute.xlu0 %1194
        %1198 = vset.pattern.permute.xlu0 0
        %1199 = vperm.xlu0 %1198, %v1165
        %v1200 = vpop.permute.xlu0 %1199
        %1203 = vset.pattern.permute.xlu0 0
        %1204 = vperm.xlu0 %1203, %v1166
        %v1205 = vpop.permute.xlu0 %1204
        %1208 = vset.pattern.permute.xlu0 0
        %1209 = vperm.xlu0 %1208, %v1167
        %v1210 = vpop.permute.xlu0 %1209
        %1213 = vset.pattern.permute.xlu0 0
        %1214 = vperm.xlu0 %1213, %v1168
        %v1215 = vpop.permute.xlu0 %1214
        %1218 = vset.pattern.permute.xlu0 0
        %1219 = vperm.xlu0 %1218, %v1169
        %v1220 = vpop.permute.xlu0 %1219
        %1223 = vset.pattern.permute.xlu0 0
        %1224 = vperm.xlu0 %1223, %v1170
        %v1225 = vpop.permute.xlu0 %1224
        %1228 = vset.pattern.permute.xlu0 0
        %1229 = vperm.xlu0 %1228, %v1171
        %v1230 = vpop.permute.xlu0 %1229
        %1233 = vset.pattern.permute.xlu0 0
        %1234 = vperm.xlu0 %1233, %v1172
        %v1235 = vpop.permute.xlu0 %1234
        %1238 = vset.pattern.permute.xlu0 0
        %1239 = vperm.xlu0 %1238, %v1173
        %v1240 = vpop.permute.xlu0 %1239
        %1243 = vset.pattern.permute.xlu0 0
        %1244 = vperm.xlu0 %1243, %v1174
        %v1245 = vpop.permute.xlu0 %1244
        %1248 = vset.pattern.permute.xlu0 0
        %1249 = vperm.xlu0 %1248, %v1175
        %v1250 = vpop.permute.xlu0 %1249
        %1253 = vset.pattern.permute.xlu0 0
        %1254 = vperm.xlu0 %1253, %v1176
        %v1255 = vpop.permute.xlu0 %1254
        %v1273 = vunpack.c.l.b16 %v1137
        %v1274 = vunpack.c.l.b16 %v1138
        %v1275 = vunpack.c.l.b16 %v1139
        %v1276 = vunpack.c.l.b16 %v1140
        %v1277 = vunpack.c.l.b16 %v1141
        %v1278 = vunpack.c.l.b16 %v1142
        %v1279 = vunpack.c.l.b16 %v1143
        %v1280 = vunpack.c.l.b16 %v1144
        %v1281 = vunpack.c.l.b16 %v1145
        %v1282 = vunpack.c.l.b16 %v1146
        %v1283 = vunpack.c.l.b16 %v1147
        %v1284 = vunpack.c.l.b16 %v1148
        %v1285 = vunpack.c.l.b16 %v1149
        %v1286 = vunpack.c.l.b16 %v1150
        %v1287 = vunpack.c.l.b16 %v1151
        %v1288 = vunpack.c.l.b16 %v1152
        %v1289 = vpack.c.b16 %v1274, %v1273
        %v1290 = vpack.c.b16 %v1276, %v1275
        %v1291 = vpack.c.b16 %v1278, %v1277
        %v1292 = vpack.c.b16 %v1280, %v1279
        %v1293 = vpack.c.b16 %v1282, %v1281
        %v1294 = vpack.c.b16 %v1284, %v1283
        %v1295 = vpack.c.b16 %v1286, %v1285
        %v1296 = vpack.c.b16 %v1288, %v1287
        %1305 = vmatprep.subr.bf16.mxu0 0
        %1306 = vmatpush1.bf16.msra.mxu0 %v1160
        %1307 = vmatprep.subr.bf16.mxu0 0
        %1308 = vmatpush1.bf16.msra.mxu0 %v1159
        %1309 = vmatprep.subr.bf16.mxu0 0
        %1310 = vmatpush1.bf16.msra.mxu0 %v1158
        %1311 = vmatprep.subr.bf16.mxu0 0
        %1312 = vmatpush1.bf16.msra.mxu0 %v1157
        %1313 = vmatprep.subr.bf16.mxu0 0
        %1314 = vmatpush1.bf16.msra.mxu0 %v1156
        %1315 = vmatprep.subr.bf16.mxu0 0
        %1316 = vmatpush1.bf16.msra.mxu0 %v1155
        %1317 = vmatprep.subr.bf16.mxu0 0
        %1318 = vmatpush1.bf16.msra.mxu0 %v1154
        %1319 = vmatprep.subr.bf16.mxu0 0
        %1320 = vmatpush1.bf16.msra.mxu0 %v1153
        %1321 = vmatprep.subr.bf16.mxu0 0
        %1322 = vmatpush2.bf16.msra.mxu0 0
        %1323 = vmatprep.subr.bf16.mxu0 0
        %1324 = vmatpush2.bf16.msra.mxu0 0
        %1325 = vmatprep.subr.bf16.mxu0 0
        %1326 = vmatpush2.bf16.msra.mxu0 0
        %1327 = vmatprep.subr.bf16.mxu0 0
        %1328 = vmatpush2.bf16.msra.mxu0 0
        %1329 = vmatprep.subr.bf16.mxu0 0
        %1330 = vmatpush2.bf16.msra.mxu0 0
        %1331 = vmatprep.subr.bf16.mxu0 0
        %1332 = vmatpush2.bf16.msra.mxu0 0
        %1333 = vmatprep.subr.bf16.mxu0 0
        %1334 = vmatpush2.bf16.msra.mxu0 0
        %1335 = vmatprep.subr.bf16.mxu0 0
        %1336 = vmatpush2.bf16.msra.mxu0 0
        %1337 = vmatprep.mubr.bf16.mxu0 0
        %1338 = vmatmul.mubr.bf16.gmra.mxu0 %v1289
        %v1339 = vpop.f32.mrf.mxu0
        %v1340 = vadd.f32 %v1180, %v1339
        %v1341 = vpop.f32.mrf.mxu0
        %v1342 = vpop.f32.mrf.mxu0
        %v1343 = vadd.f32 %v1185, %v1342
        %v1344 = vpop.f32.mrf.mxu0
        %1345 = vmatprep.mubr.bf16.mxu0 0
        %1346 = vmatmul.mubr.bf16.gmra.mxu0 %v1290
        %v1347 = vpop.f32.mrf.mxu0
        %v1348 = vadd.f32 %v1190, %v1347
        %v1349 = vpop.f32.mrf.mxu0
        %v1350 = vpop.f32.mrf.mxu0
        %v1351 = vadd.f32 %v1195, %v1350
        %v1352 = vpop.f32.mrf.mxu0
        %1353 = vmatprep.mubr.bf16.mxu0 0
        %1354 = vmatmul.mubr.bf16.gmra.mxu0 %v1291
        %v1355 = vpop.f32.mrf.mxu0
        %v1356 = vadd.f32 %v1200, %v1355
        %v1357 = vpop.f32.mrf.mxu0
        %v1358 = vpop.f32.mrf.mxu0
        %v1359 = vadd.f32 %v1205, %v1358
        %v1360 = vpop.f32.mrf.mxu0
        %1361 = vmatprep.mubr.bf16.mxu0 0
        %1362 = vmatmul.mubr.bf16.gmra.mxu0 %v1292
        %v1363 = vpop.f32.mrf.mxu0
        %v1364 = vadd.f32 %v1210, %v1363
        %v1365 = vpop.f32.mrf.mxu0
        %v1366 = vpop.f32.mrf.mxu0
        %v1367 = vadd.f32 %v1215, %v1366
        %v1368 = vpop.f32.mrf.mxu0
        %1369 = vmatprep.mubr.bf16.mxu0 0
        %1370 = vmatmul.mubr.bf16.gmra.mxu0 %v1293
        %v1371 = vpop.f32.mrf.mxu0
        %v1372 = vadd.f32 %v1220, %v1371
        %v1373 = vpop.f32.mrf.mxu0
        %v1374 = vpop.f32.mrf.mxu0
        %v1375 = vadd.f32 %v1225, %v1374
        %v1376 = vpop.f32.mrf.mxu0
        %1377 = vmatprep.mubr.bf16.mxu0 0
        %1378 = vmatmul.mubr.bf16.gmra.mxu0 %v1294
        %v1379 = vpop.f32.mrf.mxu0
        %v1380 = vadd.f32 %v1230, %v1379
        %v1381 = vpop.f32.mrf.mxu0
        %v1382 = vpop.f32.mrf.mxu0
        %v1383 = vadd.f32 %v1235, %v1382
        %v1384 = vpop.f32.mrf.mxu0
        %1385 = vmatprep.mubr.bf16.mxu0 0
        %1386 = vmatmul.mubr.bf16.gmra.mxu0 %v1295
        %v1387 = vpop.f32.mrf.mxu0
        %v1388 = vadd.f32 %v1240, %v1387
        %v1389 = vpop.f32.mrf.mxu0
        %v1390 = vpop.f32.mrf.mxu0
        %v1391 = vadd.f32 %v1245, %v1390
        %v1392 = vpop.f32.mrf.mxu0
        %1393 = vmatprep.mubr.bf16.mxu0 0
        %1394 = vmatmul.mubr.bf16.gmra.mxu0 %v1296
        %v1395 = vpop.f32.mrf.mxu0
        %v1396 = vadd.f32 %v1250, %v1395
        %v1397 = vpop.f32.mrf.mxu0
        %v1398 = vpop.f32.mrf.mxu0
        %v1399 = vadd.f32 %v1255, %v1398
        %v1400 = vpop.f32.mrf.mxu0
        %1401 = vdwg.mxu0
        %v1402 = vmax.f32 %v1340, 0.0
        %v1403 = vmax.f32 %v1343, 0.0
        %v1404 = vmax.f32 %v1348, 0.0
        %v1405 = vmax.f32 %v1351, 0.0
        %v1406 = vmax.f32 %v1356, 0.0
        %v1407 = vmax.f32 %v1359, 0.0
        %v1408 = vmax.f32 %v1364, 0.0
        %v1409 = vmax.f32 %v1367, 0.0
        %v1410 = vmax.f32 %v1372, 0.0
        %v1411 = vmax.f32 %v1375, 0.0
        %v1412 = vmax.f32 %v1380, 0.0
        %v1413 = vmax.f32 %v1383, 0.0
        %v1414 = vmax.f32 %v1388, 0.0
        %v1415 = vmax.f32 %v1391, 0.0
        %v1416 = vmax.f32 %v1396, 0.0
        %v1417 = vmax.f32 %v1399, 0.0
        %v1418 = vld [vmem:[%s8] sm:$0xff]
        %v1419 = vld [vmem:[%s8 + $0x8] sm:$0xff]
        %v1420 = vld [vmem:[%s8 + $0x10] sm:$0xff]
        %v1421 = vld [vmem:[%s8 + $0x18] sm:$0xff]
        %v1422 = vld [vmem:[%s8 + $0x20] sm:$0xff]
        %v1423 = vld [vmem:[%s8 + $0x28] sm:$0xff]
        %v1424 = vld [vmem:[%s8 + $0x30] sm:$0xff]
        %v1425 = vld [vmem:[%s8 + $0x38] sm:$0xff]
        %v1426 = vld [vmem:[%s8 + $0x40] sm:$0xff]
        %v1427 = vld [vmem:[%s8 + $0x48] sm:$0xff]
        %v1428 = vld [vmem:[%s8 + $0x50] sm:$0xff]
        %v1429 = vld [vmem:[%s8 + $0x58] sm:$0xff]
        %v1430 = vld [vmem:[%s8 + $0x60] sm:$0xff]
        %v1431 = vld [vmem:[%s8 + $0x68] sm:$0xff]
        %v1432 = vld [vmem:[%s8 + $0x70] sm:$0xff]
        %v1433 = vld [vmem:[%s8 + $0x78] sm:$0xff]
        %1435 = vset.pattern.permute.xlu0 0
        %1436 = vperm.xlu0 %1435, %v1418
        %v1437 = vpop.permute.xlu0 %1436
        %1440 = vset.pattern.permute.xlu0 0
        %1441 = vperm.xlu0 %1440, %v1419
        %v1442 = vpop.permute.xlu0 %1441
        %1445 = vset.pattern.permute.xlu0 0
        %1446 = vperm.xlu0 %1445, %v1420
        %v1447 = vpop.permute.xlu0 %1446
        %1450 = vset.pattern.permute.xlu0 0
        %1451 = vperm.xlu0 %1450, %v1421
        %v1452 = vpop.permute.xlu0 %1451
        %1455 = vset.pattern.permute.xlu0 0
        %1456 = vperm.xlu0 %1455, %v1422
        %v1457 = vpop.permute.xlu0 %1456
        %1460 = vset.pattern.permute.xlu0 0
        %1461 = vperm.xlu0 %1460, %v1423
        %v1462 = vpop.permute.xlu0 %1461
        %1465 = vset.pattern.permute.xlu0 0
        %1466 = vperm.xlu0 %1465, %v1424
        %v1467 = vpop.permute.xlu0 %1466
        %1470 = vset.pattern.permute.xlu0 0
        %1471 = vperm.xlu0 %1470, %v1425
        %v1472 = vpop.permute.xlu0 %1471
        %1475 = vset.pattern.permute.xlu0 0
        %1476 = vperm.xlu0 %1475, %v1426
        %v1477 = vpop.permute.xlu0 %1476
        %1480 = vset.pattern.permute.xlu0 0
        %1481 = vperm.xlu0 %1480, %v1427
        %v1482 = vpop.permute.xlu0 %1481
        %1485 = vset.pattern.permute.xlu0 0
        %1486 = vperm.xlu0 %1485, %v1428
        %v1487 = vpop.permute.xlu0 %1486
        %1490 = vset.pattern.permute.xlu0 0
        %1491 = vperm.xlu0 %1490, %v1429
        %v1492 = vpop.permute.xlu0 %1491
        %1495 = vset.pattern.permute.xlu0 0
        %1496 = vperm.xlu0 %1495, %v1430
        %v1497 = vpop.permute.xlu0 %1496
        %1500 = vset.pattern.permute.xlu0 0
        %1501 = vperm.xlu0 %1500, %v1431
        %v1502 = vpop.permute.xlu0 %1501
        %1505 = vset.pattern.permute.xlu0 0
        %1506 = vperm.xlu0 %1505, %v1432
        %v1507 = vpop.permute.xlu0 %1506
        %1510 = vset.pattern.permute.xlu0 0
        %1511 = vperm.xlu0 %1510, %v1433
        %v1512 = vpop.permute.xlu0 %1511
        %v1514 = vmul.f32 %v1402, %v1437
        %v1515 = vmul.f32 %v1403, %v1442
        %v1516 = vmul.f32 %v1404, %v1447
        %v1517 = vmul.f32 %v1405, %v1452
        %v1518 = vmul.f32 %v1406, %v1457
        %v1519 = vmul.f32 %v1407, %v1462
        %v1520 = vmul.f32 %v1408, %v1467
        %v1521 = vmul.f32 %v1409, %v1472
        %v1522 = vmul.f32 %v1410, %v1477
        %v1523 = vmul.f32 %v1411, %v1482
        %v1524 = vmul.f32 %v1412, %v1487
        %v1525 = vmul.f32 %v1413, %v1492
        %v1526 = vmul.f32 %v1414, %v1497
        %v1527 = vmul.f32 %v1415, %v1502
        %v1528 = vmul.f32 %v1416, %v1507
        %v1529 = vmul.f32 %v1417, %v1512
        %v1530 = vadd.f32 %v1514, %v1515
        %v1531 = vadd.f32 %v1530, %v1516
        %v1532 = vadd.f32 %v1531, %v1517
        %v1533 = vadd.f32 %v1532, %v1518
        %v1534 = vadd.f32 %v1533, %v1519
        %v1535 = vadd.f32 %v1534, %v1520
        %v1536 = vadd.f32 %v1535, %v1521
        %v1537 = vadd.f32 %v1536, %v1522
        %v1538 = vadd.f32 %v1537, %v1523
        %v1539 = vadd.f32 %v1538, %v1524
        %v1540 = vadd.f32 %v1539, %v1525
        %v1541 = vadd.f32 %v1540, %v1526
        %v1542 = vadd.f32 %v1541, %v1527
        %v1543 = vadd.f32 %v1542, %v1528
        %v1544 = vadd.f32 %v1543, %v1529
        %v1545 = vrot.slane %v1544, 4
        %v1546 = vadd.f32 %v1544, %v1545
        %v1547 = vrot.slane %v1546, 2
        %v1548 = vadd.f32 %v1546, %v1547
        %v1549 = vrot.slane %v1548, 1
        %v1550 = vadd.f32 %v1548, %v1549
        %v1551 = vld [vmem:[#allocation2] sm:$0x1]
        %1553 = vset.pattern.permute.xlu0 0
        %1554 = vperm.xlu0 %1553, %v1551
        %v1555 = vpop.permute.xlu0 %1554
        %v1557 = vlaneseq
        %v1558 = vshrl.u32 %v1557, 7
        %v1559 = vsub.s32 0, %v1558
        %v1560 = vrot.slane %v1555, %v1559
        %v1561 = vadd.f32 %v1550, %v1560
        %1562 = vst [vmem:[%s381] sm:$0x1] %v1561
        %s1563 = sand.u32 %s259, 1
        %s1564 = scalar_lea.sflag [#allocation4], %s1563
        %s1565 = sand.u32 %s259, 1
        %s1566 = scalar_lea.vmem [#allocation3], %s1565
        // Predicated region
        $region61: #{match_module_forward.1} parent=59 // pred_check
          %p1567 = pneg %p269
        $region62: #{match_module_forward.1} parent=59 // pred_check_branch
          %1569 = sbr.rel (%p1567) target = $region64
        $region63: #{match_module_forward.1} parent=59 // pred_region
          %s1571 = ssub.s32 16, 16
          %1572 = vsyncadd %s1564, %s1571
          %s1573 = smul.addr %s26, 16
          %s1574 = scalar_lea.hbm %s10, %s1573
          %s1576 = sshll.u32 %s1566, 4
          %s1577 = int_to_ptr.vmem [resolvable:$true] %s1576
          %1579 = dma.vmem_to_hbm [thread:$0]  %s1577, 16, %s1574, %s1564
        $region64: #{match_module_forward.1} parent=59 // pred_fallthru
          _
      $region60: #{match_module_forward.1} parent=5 // pred_fallthru
        _
      %p1580 = scmp.le.s32.totalorder 2, %s21
      // Predicated region
      $region65: #{match_module_forward.1} parent=5 // pred_check
        %p1581 = pneg %p1580
      $region66: #{match_module_forward.1} parent=5 // pred_check_branch
        %1583 = sbr.rel (%p1581) target = $region68
      $region67: #{match_module_forward.1} parent=5 // pred_region
        %s1584 = ssub.s32 %s21, 2
        // Predicated region
        $region69: #{match_module_forward.1} parent=67 // pred_check
          %p1585 = pneg %p275
        $region70: #{match_module_forward.1} parent=67 // pred_check_branch
          %1587 = sbr.rel (%p1585) target = $region72
        $region71: #{match_module_forward.1} parent=67 // pred_region
          %s1588 = sand.u32 %s260, 1
          %s1589 = scalar_lea.sflag [#allocation4], %s1588
          %s1590 = sand.u32 %s260, 1
          %s1591 = scalar_lea.vmem [#allocation3], %s1590
          %1592 = dma.done %s1589, 16
        $region72: #{match_module_forward.1} parent=67 // pred_fallthru
          _
      $region68: #{match_module_forward.1} parent=5 // pred_fallthru
        _
    $region6: #{match_module_forward.1} parent=1 // loop_footer
      %s25 = sadd.s32 1, %s21
    $region7: #{match_module_forward.1} parent=1 // loop_footer_branch
      %20 = sbr.rel target = $region3
    $region8: #{match_module_forward.1} parent=1 // loop_exit
      _
    %1593 = vsyncpa [#allocation4], 1
    %s1594 = scalar_lea.sflag [#allocation4], 1
    %1595 = vsyncpa %s1594, 1

</llo_original>
